<compile_context>
chip_gen: v6e
topology: v6e:2x2x1
jax: 0.10.0
libtpu: 0.0.40
codegen_flags: <defaults>
</compile_context>

<pallas_src>
import functools

import jax
import jax.numpy as jnp
from jax import lax
from jax.experimental import pallas as pl
from jax.experimental.pallas import tpu as pltpu


def _round_up(a, b):
    return ((a + b - 1) // b) * b


def graph_attention_kernel(as_ref, ad_ref, x_ref, row_ref, col_ref, ex_ref,
                           wo_ref, bo_ref, out_ref,
                           m_sc, l_sc, acc_sc,
                           *, num_heads, leaky_slope):
    e = pl.program_id(1)
    nh = num_heads
    f32 = jnp.float32

    @pl.when(e == 0)
    def _init():
        # torch index_reduce_('amax', include_self=True) on a zero buffer
        # => the per-destination max always includes 0, so init m to 0.
        m_sc[...] = jnp.zeros_like(m_sc)
        l_sc[...] = jnp.zeros_like(l_sc)
        acc_sc[...] = jnp.zeros_like(acc_sc)

    # One int8 -> f32 upcast per one-hot tile (the one-hots stream from HBM as
    # int8; value math is kept f32 for exact parity with the f32 reference —
    # flipping these dots to bf16 buys the MXU fast path at ~1% output error).
    row_f = row_ref[...].astype(f32)                                     # (TE, N_pad)
    col_f = col_ref[...].astype(f32)                                     # (TE, TN)

    # Per-edge attention logits via MXU gathers, then LeakyReLU(0.2).
    s = (jnp.dot(row_f, as_ref[...], preferred_element_type=f32)
         + jnp.dot(col_f, ad_ref[...], preferred_element_type=f32))     # (TE, nh)
    s = jnp.where(s > 0, s, leaky_slope * s)

    # ---- exact per-destination running max (review item 1) -----------------
    # Since the torch max includes 0:
    #   m[h, n] = max(0, max_{e: col(e)=n} s[e, h]) = max_e relu(s[e,h]) * col_oh[e,n]
    # -> one VPU multiply per (edge,node) element + a sublane max-reduce per
    # head; no compares / selects / bool masks / (1,N) concatenates.
    relu_s = jnp.maximum(s, 0.0)                                         # (TE, nh)
    m_old = m_sc[...]                                                    # (nh, TN)
    for h in range(nh):                                                  # nh tiny & static
        mh = jnp.max(relu_s[:, h:h + 1] * col_f, axis=0, keepdims=True)  # (1, TN)
        m_sc[pl.ds(h, 1), :] = jnp.maximum(m_old[h:h + 1, :], mh)
    m_new = m_sc[...]                                                    # (nh, TN)
    rescale = jnp.exp(m_old - m_new)                                     # (nh, TN), <= 1

    # Gather each edge's destination running max (contract the node axis).
    m_edge = lax.dot_general(col_f, m_new, (((1,), (1,)), ((), ())),
                             preferred_element_type=f32)                 # (TE, nh)
    p = jnp.exp(s - m_edge)                                              # (TE, nh)

    # Running softmax denominator: scatter-add exp over destinations (contract TE).
    l_upd = lax.dot_general(p, col_f, (((0,), (0,)), ((), ())),
                            preferred_element_type=f32)                  # (nh, TN)
    l_sc[...] = rescale * l_sc[...] + l_upd

    # Weighted aggregation of the ORIGINAL node features, lane-dense over full H.
    x_src = jnp.dot(row_f, x_ref[...], preferred_element_type=f32)       # (TE, H)
    p_full = jnp.dot(p, ex_ref[...], preferred_element_type=f32)         # (TE, H) head->lanes
    weighted = x_src * p_full                                            # (TE, H)
    scat = lax.dot_general(col_f, weighted, (((0,), (0,)), ((), ())),
                           preferred_element_type=f32)                   # (TN, H)
    rescale_full = lax.dot_general(rescale, ex_ref[...], (((0,), (0,)), ((), ())),
                                   preferred_element_type=f32)           # (TN, H)
    acc_sc[...] = rescale_full * acc_sc[...] + scat

    # ---- finalize: normalize and apply out_proj -----------------------------
    @pl.when(e == pl.num_programs(1) - 1)
    def _finalize():
        inv = pl.reciprocal(l_sc[...] + 1e-10, approx=False)             # (nh, TN)
        inv_full = lax.dot_general(inv, ex_ref[...], (((0,), (0,)), ((), ())),
                                   preferred_element_type=f32)           # (TN, H)
        agg = acc_sc[...] * inv_full
        # TODO(synk): H=32 < 128 lanes -> masked output stores; a transposed
        # (H, N) value path (review item 10) only pays once the kernel is
        # MXU-bound at production sizes.
        out_ref[...] = (jnp.dot(agg, wo_ref[...], preferred_element_type=f32)
                        + bo_ref[...])


def _vmem_capacity_bytes():
    try:
        info = pltpu.get_tpu_info()
        cap = int(getattr(info, "vmem_capacity_bytes", 0))
        if cap > 0:
            return cap
    except Exception:
        pass
    return 64 * 1024 * 1024          # conservative (v7x) default


def graph_attention_pallas(x, wn_t, bn, attn_w, wo_t, bo, row, col,
                           num_heads, head_dim, tile_e=None, tile_n=None):
    N, H = x.shape
    nh = num_heads
    two_hd = 2 * head_dim
    E = row.shape[0]
    f32 = jnp.float32

    # ---- node padding / optional destination-node tiling (review items 6/8):
    # pad the node lane axis to a multiple of 128; a tile_n < N_pad adds a
    # leading "parallel" grid axis (v7x megacore).  Padded node columns are
    # never referenced by any edge and are sliced away at the end.
    if tile_n is None:
        n_pad = _round_up(N, 128)
        tile_n = n_pad
    else:
        tile_n = min(_round_up(tile_n, 128), _round_up(N, 128))
        n_pad = _round_up(N, tile_n)
    n_blocks = n_pad // tile_n

    # ---- node projection + per-node attention logits in plain XLA (review item 7).
    # TODO(synk): the PyTorch module declares attention_weights as
    # (num_heads, 2*head_dim), which is shape-inconsistent with cat([src, dst])
    # (4*head_dim per head) and would raise at runtime; we use
    # (num_heads, 4*head_dim) as the working interpretation.
    proj = x.astype(f32) @ wn_t.astype(f32) + bn.astype(f32)[None, :]     # (N, 2H)
    proj_h = proj.reshape(N, nh, two_hd)
    a_src = attn_w[:, :two_hd].astype(f32)
    a_dst = attn_w[:, two_hd:].astype(f32)
    alpha_src = jnp.einsum("nhd,hd->nh", proj_h, a_src)                   # (N, nh)
    alpha_dst = jnp.einsum("nhd,hd->nh", proj_h, a_dst)                   # (N, nh)
    as_pad = jnp.zeros((n_pad, nh), f32).at[:N].set(alpha_src)
    ad_pad = jnp.zeros((n_pad, nh), f32).at[:N].set(alpha_dst)
    x_pad = jnp.zeros((n_pad, H), f32).at[:N].set(x.astype(f32))

    # ---- edge-tile size from an explicit VMEM budget (review items 4/5).
    vmem_cap = _vmem_capacity_bytes()
    # TODO(synk): the block-index-constant inputs below are still double-
    # buffered by the pipeliner; pl.Buffered(1) on their BlockSpecs (review
    # item 9) would free the second buffer — the budget charges 2x for them.
    resident = 2 * 4 * (n_pad * H + n_pad * nh + tile_n * nh
                        + nh * H + H * H + H + tile_n * H)    # 2x-buffered f32 in/out
    scratch = 4 * (2 * 8 * tile_n + tile_n * H)               # m, l (8-sublane pad), acc
    budget = int(0.55 * vmem_cap) - resident - scratch
    per_edge_row = 2 * (n_pad + tile_n)                       # 2 bufs x int8 row/col tiles
    tile_cap = max(32, (budget // per_edge_row) // 32 * 32)
    if tile_e is None:
        tile_e = int(min(tile_cap, 2048, _round_up(E, 32)))
    else:
        tile_e = int(min(_round_up(tile_e, 32), _round_up(E, 32)))
    e_pad = _round_up(E, tile_e)
    grid_e = e_pad // tile_e

    # ---- dense one-hot edge matrices, shipped as int8 (review item 3);
    # padded edges (id -1) are all-zero rows and drop out of every reduction.
    row_p = jnp.full((e_pad,), -1, jnp.int32).at[:E].set(row.astype(jnp.int32))
    col_p = jnp.full((e_pad,), -1, jnp.int32).at[:E].set(col.astype(jnp.int32))
    node_ids = jnp.arange(n_pad, dtype=jnp.int32)[None, :]
    row_oh = (row_p[:, None] == node_ids).astype(jnp.int8)                # (E_pad, N_pad)
    col_oh = (col_p[:, None] == node_ids).astype(jnp.int8)                # (E_pad, N_pad)

    # head -> lane-block expansion matrix (nh, H): ex[h, h*hd:(h+1)*hd] = 1
    ex_mat = jnp.repeat(jnp.eye(nh, dtype=f32), head_dim, axis=1)
    wo2 = wo_t.astype(f32)
    bo2 = bo.reshape(1, -1).astype(f32)

    kernel = functools.partial(graph_attention_kernel,
                               num_heads=nh, leaky_slope=0.2)

    grid_spec = pltpu.PrefetchScalarGridSpec(
        num_scalar_prefetch=0,
        grid=(n_blocks, grid_e),
        in_specs=[
            pl.BlockSpec((n_pad, nh), lambda n, e: (0, 0)),        # alpha_src (resident)
            pl.BlockSpec((tile_n, nh), lambda n, e: (n, 0)),       # alpha_dst (node block)
            pl.BlockSpec((n_pad, H), lambda n, e: (0, 0)),         # x (resident)
            pl.BlockSpec((tile_e, n_pad), lambda n, e: (e, 0)),    # row one-hot (int8)
            pl.BlockSpec((tile_e, tile_n), lambda n, e: (e, n)),   # col one-hot (int8)
            pl.BlockSpec((nh, H), lambda n, e: (0, 0)),            # head expansion
            pl.BlockSpec((H, H), lambda n, e: (0, 0)),             # out_proj weight
            pl.BlockSpec((1, H), lambda n, e: (0, 0)),             # out_proj bias
        ],
        out_specs=pl.BlockSpec((tile_n, H), lambda n, e: (n, 0)),
        scratch_shapes=[
            pltpu.VMEM((nh, tile_n), f32),     # running max  m
            pltpu.VMEM((nh, tile_n), f32),     # running sum  l
            pltpu.VMEM((tile_n, H), f32),      # running weighted accumulator
        ],
    )

    tiles = n_blocks * grid_e
    cost = pl.CostEstimate(
        flops=int(2 * tiles * tile_e * (n_pad * (H + nh) + tile_n * (H + 3 * nh) + nh * H)
                  + 2 * n_blocks * tile_n * (H * H + 2 * nh * H)),
        transcendentals=int(tiles * (tile_e * nh + nh * tile_n)),
        bytes_accessed=int(tiles * tile_e * (n_pad + tile_n)
                           + 4 * (2 * n_pad * H + 2 * n_pad * nh + H * H)),
    )

    out_pad = pl.pallas_call(
        kernel,
        out_shape=jax.ShapeDtypeStruct((n_pad, H), f32),
        grid_spec=grid_spec,
        compiler_params=pltpu.CompilerParams(
            dimension_semantics=("parallel", "arbitrary"),
            vmem_limit_bytes=int(min(0.9 * vmem_cap, 128 * 1024 * 1024)),
        ),
        cost_estimate=cost,
    )(as_pad, ad_pad, x_pad, row_oh, col_oh, ex_mat, wo2, bo2)

    # TODO(synk): for graphs with N beyond a few thousand, the dense E x N
    # one-hot streams (O(E*N) bytes) should give way to a destination-sorted
    # CSR + scalar-prefetch gather formulation (O(E*H) bytes, review item 12).
    return out_pad[:N]


def graph_attention_reference(x, wn_t, bn, attn_w, wo_t, bo, row, col,
                              num_heads, head_dim):
    """Pure-JAX reference mirroring the PyTorch forward (eval mode)."""
    N, H = x.shape
    proj = (x @ wn_t + bn).reshape(N, num_heads, 2 * head_dim)
    src = proj[row]
    dst = proj[col]
    cat = jnp.concatenate([src, dst], axis=-1)                  # (E, nh, 4*hd)
    scores = (cat * attn_w[None]).sum(-1)                       # (E, nh)
    scores = jnp.where(scores > 0, scores, 0.2 * scores)        # LeakyReLU(0.2)
    max_scores = jnp.zeros((N, num_heads)).at[col].max(scores)  # include_self=True (zeros)
    ex = jnp.exp(scores - max_scores[col])
    sum_exp = jnp.zeros((N, num_heads)).at[col].add(ex)
    attn = ex / (sum_exp[col] + 1e-10)
    xm = x.reshape(N, num_heads, head_dim)
    weighted = xm[row] * attn[:, :, None]
    out = jnp.zeros((N, num_heads, head_dim)).at[col].add(weighted)
    return out.reshape(N, H) @ wo_t + bo


if __name__ == "__main__":
    key = jax.random.PRNGKey(0)
    N, H, num_heads = 130, 32, 4
    head_dim = H // num_heads
    E = 200

    ks = jax.random.split(key, 8)
    x = jax.random.normal(ks[0], (N, H), jnp.float32)
    # node_proj: Linear(H, 2H) -> stored as transposed weight (H, 2H)
    wn_t = jax.random.normal(ks[1], (H, 2 * H), jnp.float32) * (1.0 / jnp.sqrt(H))
    bn = jax.random.normal(ks[2], (2 * H,), jnp.float32) * 0.1
    attn_w = jax.random.normal(ks[3], (num_heads, 4 * head_dim), jnp.float32) * 0.3
    # out_proj: Linear(H, H) -> stored as transposed weight (H, H)
    wo_t = jax.random.normal(ks[4], (H, H), jnp.float32) * (1.0 / jnp.sqrt(H))
    bo = jax.random.normal(ks[5], (H,), jnp.float32) * 0.1

    row = jax.random.randint(ks[6], (E,), 0, N)   # edge source nodes
    col = jax.random.randint(ks[7], (E,), 0, N)   # edge destination nodes

    ref = graph_attention_reference(x, wn_t, bn, attn_w, wo_t, bo, row, col,
                                    num_heads, head_dim)

    # Multi-tile path: 2 destination-node blocks ("parallel") x 4 edge tiles
    # ("arbitrary") -> exercises the online softmax and the node-parallel axis.
    out_tiled = graph_attention_pallas(x, wn_t, bn, attn_w, wo_t, bo, row, col,
                                       num_heads, head_dim, tile_e=64, tile_n=128)
    out_tiled = jax.block_until_ready(out_tiled)
    err_t = float(jnp.max(jnp.abs(out_tiled - ref)))
    assert jnp.allclose(out_tiled, ref, atol=2e-3, rtol=2e-3), f"tiled max abs err = {err_t}"

    # Default path: tile sizes derived from the VMEM budget (single tile here).
    out_single = graph_attention_pallas(x, wn_t, bn, attn_w, wo_t, bo, row, col,
                                        num_heads, head_dim)
    out_single = jax.block_until_ready(out_single)
    err_s = float(jnp.max(jnp.abs(out_single - ref)))
    assert jnp.allclose(out_single, ref, atol=2e-3, rtol=2e-3), f"single max abs err = {err_s}"

    print("KERNEL_OK")
</pallas_src>

<mosaic_0001>
module attributes {stable_mosaic.version = 11 : i64} {
  func.func @graph_attention_kernel(%arg0: i32, %arg1: i32, %arg2: memref<256x4xf32, #tpu.memory_space<vmem>>, %arg3: memref<128x4xf32, #tpu.memory_space<vmem>>, %arg4: memref<256x32xf32, #tpu.memory_space<vmem>>, %arg5: memref<64x256xi8, #tpu.memory_space<vmem>>, %arg6: memref<64x128xi8, #tpu.memory_space<vmem>>, %arg7: memref<4x32xf32, #tpu.memory_space<vmem>>, %arg8: memref<32x32xf32, #tpu.memory_space<vmem>>, %arg9: memref<1x32xf32, #tpu.memory_space<vmem>>, %arg10: memref<128x32xf32, #tpu.memory_space<vmem>>, %arg11: memref<4x128xf32, #tpu.memory_space<vmem>>, %arg12: memref<4x128xf32, #tpu.memory_space<vmem>>, %arg13: memref<128x32xf32, #tpu.memory_space<vmem>>) attributes {dimension_semantics = [#tpu.dimension_semantics<parallel>, #tpu.dimension_semantics<arbitrary>], iteration_bounds = array<i64: 2, 4>, scalar_prefetch = 0 : i64, scratch_operands = 3 : i64, tpu.core_type = #tpu.core_type<tc>, window_params = [{pipeline_mode = #tpu.pipeline_mode<synchronous>, transform_indices = @transform_0, window_bounds = array<i64: 256, 4>}, {transform_indices = @transform_1, window_bounds = array<i64: 128, 4>}, {pipeline_mode = #tpu.pipeline_mode<synchronous>, transform_indices = @transform_2, window_bounds = array<i64: 256, 32>}, {transform_indices = @transform_3, window_bounds = array<i64: 64, 256>}, {transform_indices = @transform_4, window_bounds = array<i64: 64, 128>}, {pipeline_mode = #tpu.pipeline_mode<synchronous>, transform_indices = @transform_5, window_bounds = array<i64: 4, 32>}, {pipeline_mode = #tpu.pipeline_mode<synchronous>, transform_indices = @transform_6, window_bounds = array<i64: 32, 32>}, {pipeline_mode = #tpu.pipeline_mode<synchronous>, transform_indices = @transform_7, window_bounds = array<i64: 1, 32>}, {transform_indices = @transform_8, window_bounds = array<i64: 128, 32>}]} {
    %c0_i32 = arith.constant 0 : i32
    %0 = arith.cmpi eq, %arg1, %c0_i32 : i32
    %1 = arith.extui %0 : i1 to i32
    %c0_i32_0 = arith.constant 0 : i32
    %2 = arith.cmpi ne, %1, %c0_i32_0 : i32
    scf.if %2 {
      %cst_46 = arith.constant 0.000000e+00 : f32
      %78 = vector.broadcast %cst_46 : f32 to vector<4x128xf32>
      %c0_47 = arith.constant 0 : index
      %c0_48 = arith.constant 0 : index
      %79 = vector.load %arg11[%c0_47, %c0_48] : memref<4x128xf32, #tpu.memory_space<vmem>>, vector<4x128xf32>
      tpu.vector_store %arg11[%c0_47, %c0_48], %78 {strides = array<i32>} : memref<4x128xf32, #tpu.memory_space<vmem>>, vector<4x128xf32>,
      %cst_49 = arith.constant 0.000000e+00 : f32
      %80 = vector.broadcast %cst_49 : f32 to vector<4x128xf32>
      %c0_50 = arith.constant 0 : index
      %c0_51 = arith.constant 0 : index
      %81 = vector.load %arg12[%c0_50, %c0_51] : memref<4x128xf32, #tpu.memory_space<vmem>>, vector<4x128xf32>
      tpu.vector_store %arg12[%c0_50, %c0_51], %80 {strides = array<i32>} : memref<4x128xf32, #tpu.memory_space<vmem>>, vector<4x128xf32>,
      %cst_52 = arith.constant 0.000000e+00 : f32
      %82 = vector.broadcast %cst_52 : f32 to vector<128x32xf32>
      %c0_53 = arith.constant 0 : index
      %c0_54 = arith.constant 0 : index
      %83 = vector.load %arg13[%c0_53, %c0_54] : memref<128x32xf32, #tpu.memory_space<vmem>>, vector<128x32xf32>
      tpu.vector_store %arg13[%c0_53, %c0_54], %82 {strides = array<i32>} : memref<128x32xf32, #tpu.memory_space<vmem>>, vector<128x32xf32>,
    } else {
    }
    %c0 = arith.constant 0 : index
    %c0_1 = arith.constant 0 : index
    %3 = vector.load %arg5[%c0, %c0_1] : memref<64x256xi8, #tpu.memory_space<vmem>>, vector<64x256xi8>
    %4 = arith.sitofp %3 : vector<64x256xi8> to vector<64x256xf32>
    %c0_2 = arith.constant 0 : index
    %c0_3 = arith.constant 0 : index
    %5 = vector.load %arg6[%c0_2, %c0_3] : memref<64x128xi8, #tpu.memory_space<vmem>>, vector<64x128xi8>
    %6 = arith.sitofp %5 : vector<64x128xi8> to vector<64x128xf32>
    %c0_4 = arith.constant 0 : index
    %c0_5 = arith.constant 0 : index
    %7 = vector.load %arg2[%c0_4, %c0_5] : memref<256x4xf32, #tpu.memory_space<vmem>>, vector<256x4xf32>
    %cst = arith.constant dense<0.000000e+00> : vector<64x4xf32>
    %8 = tpu.matmul %4, %7, %cst {dimension_numbers = #tpu.dot_dimension_numbers<[1], [0], [0], [1], [0, 0, 1, 1], [], []>} : vector<64x256xf32>, vector<256x4xf32>, vector<64x4xf32> -> vector<64x4xf32>
    %c0_6 = arith.constant 0 : index
    %c0_7 = arith.constant 0 : index
    %9 = vector.load %arg3[%c0_6, %c0_7] : memref<128x4xf32, #tpu.memory_space<vmem>>, vector<128x4xf32>
    %cst_8 = arith.constant dense<0.000000e+00> : vector<64x4xf32>
    %10 = tpu.matmul %6, %9, %cst_8 {dimension_numbers = #tpu.dot_dimension_numbers<[1], [0], [0], [1], [0, 0, 1, 1], [], []>} : vector<64x128xf32>, vector<128x4xf32>, vector<64x4xf32> -> vector<64x4xf32>
    %11 = arith.addf %8, %10 : vector<64x4xf32>
    %cst_9 = arith.constant 0.000000e+00 : f32
    %12 = vector.broadcast %cst_9 : f32 to vector<64x4xf32>
    %13 = arith.cmpf ogt, %11, %12 : vector<64x4xf32>
    %cst_10 = arith.constant 2.000000e-01 : f32
    %14 = vector.broadcast %cst_10 : f32 to vector<64x4xf32>
    %15 = arith.mulf %14, %11 : vector<64x4xf32>
    %16 = arith.select %13, %11, %15 : vector<64x4xi1>, vector<64x4xf32>
    %cst_11 = arith.constant 0.000000e+00 : f32
    %17 = vector.broadcast %cst_11 : f32 to vector<64x4xf32>
    %18 = arith.maximumf %16, %17 : vector<64x4xf32>
    %c0_12 = arith.constant 0 : index
    %c0_13 = arith.constant 0 : index
    %19 = vector.load %arg11[%c0_12, %c0_13] : memref<4x128xf32, #tpu.memory_space<vmem>>, vector<4x128xf32>
    %20 = vector.extract_strided_slice %18 {offsets = [0, 0], sizes = [64, 1], strides = [1, 1]} : vector<64x4xf32> to vector<64x1xf32>
    %21 = vector.broadcast %20 : vector<64x1xf32> to vector<64x128xf32>
    %22 = arith.mulf %21, %6 : vector<64x128xf32>
    %cst_14 = arith.constant dense<0xFF800000> : vector<128xf32>
    %23 = vector.multi_reduction <maximumf>, %22, %cst_14 [0] : vector<64x128xf32> to vector<128xf32>
    %24 = vector.shape_cast %23 : vector<128xf32> to vector<1x128xf32>
    %25 = vector.extract_strided_slice %19 {offsets = [0, 0], sizes = [1, 128], strides = [1, 1]} : vector<4x128xf32> to vector<1x128xf32>
    %26 = arith.maximumf %25, %24 : vector<1x128xf32>
    %c0_15 = arith.constant 0 : index
    %c0_16 = arith.constant 0 : index
    %27 = vector.load %arg11[%c0_15, %c0_16] : memref<4x128xf32, #tpu.memory_space<vmem>>, vector<1x128xf32>
    tpu.vector_store %arg11[%c0_15, %c0_16], %26 {strides = array<i32>} : memref<4x128xf32, #tpu.memory_space<vmem>>, vector<1x128xf32>,
    %28 = vector.extract_strided_slice %18 {offsets = [0, 1], sizes = [64, 1], strides = [1, 1]} : vector<64x4xf32> to vector<64x1xf32>
    %29 = vector.broadcast %28 : vector<64x1xf32> to vector<64x128xf32>
    %30 = arith.mulf %29, %6 : vector<64x128xf32>
    %cst_17 = arith.constant dense<0xFF800000> : vector<128xf32>
    %31 = vector.multi_reduction <maximumf>, %30, %cst_17 [0] : vector<64x128xf32> to vector<128xf32>
    %32 = vector.shape_cast %31 : vector<128xf32> to vector<1x128xf32>
    %33 = vector.extract_strided_slice %19 {offsets = [1, 0], sizes = [1, 128], strides = [1, 1]} : vector<4x128xf32> to vector<1x128xf32>
    %34 = arith.maximumf %33, %32 : vector<1x128xf32>
    %c1 = arith.constant 1 : index
    %c0_18 = arith.constant 0 : index
    %35 = vector.load %arg11[%c1, %c0_18] : memref<4x128xf32, #tpu.memory_space<vmem>>, vector<1x128xf32>
    tpu.vector_store %arg11[%c1, %c0_18], %34 {strides = array<i32>} : memref<4x128xf32, #tpu.memory_space<vmem>>, vector<1x128xf32>,
    %36 = vector.extract_strided_slice %18 {offsets = [0, 2], sizes = [64, 1], strides = [1, 1]} : vector<64x4xf32> to vector<64x1xf32>
    %37 = vector.broadcast %36 : vector<64x1xf32> to vector<64x128xf32>
    %38 = arith.mulf %37, %6 : vector<64x128xf32>
    %cst_19 = arith.constant dense<0xFF800000> : vector<128xf32>
    %39 = vector.multi_reduction <maximumf>, %38, %cst_19 [0] : vector<64x128xf32> to vector<128xf32>
    %40 = vector.shape_cast %39 : vector<128xf32> to vector<1x128xf32>
    %41 = vector.extract_strided_slice %19 {offsets = [2, 0], sizes = [1, 128], strides = [1, 1]} : vector<4x128xf32> to vector<1x128xf32>
    %42 = arith.maximumf %41, %40 : vector<1x128xf32>
    %c2 = arith.constant 2 : index
    %c0_20 = arith.constant 0 : index
    %43 = vector.load %arg11[%c2, %c0_20] : memref<4x128xf32, #tpu.memory_space<vmem>>, vector<1x128xf32>
    tpu.vector_store %arg11[%c2, %c0_20], %42 {strides = array<i32>} : memref<4x128xf32, #tpu.memory_space<vmem>>, vector<1x128xf32>,
    %44 = vector.extract_strided_slice %18 {offsets = [0, 3], sizes = [64, 1], strides = [1, 1]} : vector<64x4xf32> to vector<64x1xf32>
    %45 = vector.broadcast %44 : vector<64x1xf32> to vector<64x128xf32>
    %46 = arith.mulf %45, %6 : vector<64x128xf32>
    %cst_21 = arith.constant dense<0xFF800000> : vector<128xf32>
    %47 = vector.multi_reduction <maximumf>, %46, %cst_21 [0] : vector<64x128xf32> to vector<128xf32>
    %48 = vector.shape_cast %47 : vector<128xf32> to vector<1x128xf32>
    %49 = vector.extract_strided_slice %19 {offsets = [3, 0], sizes = [1, 128], strides = [1, 1]} : vector<4x128xf32> to vector<1x128xf32>
    %50 = arith.maximumf %49, %48 : vector<1x128xf32>
    %c3 = arith.constant 3 : index
    %c0_22 = arith.constant 0 : index
    %51 = vector.load %arg11[%c3, %c0_22] : memref<4x128xf32, #tpu.memory_space<vmem>>, vector<1x128xf32>
    tpu.vector_store %arg11[%c3, %c0_22], %50 {strides = array<i32>} : memref<4x128xf32, #tpu.memory_space<vmem>>, vector<1x128xf32>,
    %c0_23 = arith.constant 0 : index
    %c0_24 = arith.constant 0 : index
    %52 = vector.load %arg11[%c0_23, %c0_24] : memref<4x128xf32, #tpu.memory_space<vmem>>, vector<4x128xf32>
    %53 = arith.subf %19, %52 : vector<4x128xf32>
    %54 = math.exp %53 : vector<4x128xf32>
    %cst_25 = arith.constant dense<0.000000e+00> : vector<64x4xf32>
    %55 = tpu.matmul %6, %52, %cst_25 {dimension_numbers = #tpu.dot_dimension_numbers<[1], [1], [0], [0], [0, 0, 1, 0], [], []>} : vector<64x128xf32>, vector<4x128xf32>, vector<64x4xf32> -> vector<64x4xf32>
    %56 = arith.subf %16, %55 : vector<64x4xf32>
    %57 = math.exp %56 : vector<64x4xf32>
    %cst_26 = arith.constant dense<0.000000e+00> : vector<4x128xf32>
    %58 = tpu.matmul %57, %6, %cst_26 {dimension_numbers = #tpu.dot_dimension_numbers<[0], [0], [1], [1], [0, 1, 1, 1], [], []>} : vector<64x4xf32>, vector<64x128xf32>, vector<4x128xf32> -> vector<4x128xf32>
    %c0_27 = arith.constant 0 : index
    %c0_28 = arith.constant 0 : index
    %59 = vector.load %arg12[%c0_27, %c0_28] : memref<4x128xf32, #tpu.memory_space<vmem>>, vector<4x128xf32>
    %60 = arith.mulf %54, %59 : vector<4x128xf32>
    %61 = arith.addf %60, %58 : vector<4x128xf32>
    %c0_29 = arith.constant 0 : index
    %c0_30 = arith.constant 0 : index
    %62 = vector.load %arg12[%c0_29, %c0_30] : memref<4x128xf32, #tpu.memory_space<vmem>>, vector<4x128xf32>
    tpu.vector_store %arg12[%c0_29, %c0_30], %61 {strides = array<i32>} : memref<4x128xf32, #tpu.memory_space<vmem>>, vector<4x128xf32>,
    %c0_31 = arith.constant 0 : index
    %c0_32 = arith.constant 0 : index
    %63 = vector.load %arg4[%c0_31, %c0_32] : memref<256x32xf32, #tpu.memory_space<vmem>>, vector<256x32xf32>
    %cst_33 = arith.constant dense<0.000000e+00> : vector<64x32xf32>
    %64 = tpu.matmul %4, %63, %cst_33 {dimension_numbers = #tpu.dot_dimension_numbers<[1], [0], [0], [1], [0, 0, 1, 1], [], []>} : vector<64x256xf32>, vector<256x32xf32>, vector<64x32xf32> -> vector<64x32xf32>
    %c0_34 = arith.constant 0 : index
    %c0_35 = arith.constant 0 : index
    %65 = vector.load %arg7[%c0_34, %c0_35] : memref<4x32xf32, #tpu.memory_space<vmem>>, vector<4x32xf32>
    %cst_36 = arith.constant dense<0.000000e+00> : vector<64x32xf32>
    %66 = tpu.matmul %57, %65, %cst_36 {dimension_numbers = #tpu.dot_dimension_numbers<[1], [0], [0], [1], [0, 0, 1, 1], [], []>} : vector<64x4xf32>, vector<4x32xf32>, vector<64x32xf32> -> vector<64x32xf32>
    %67 = arith.mulf %64, %66 : vector<64x32xf32>
    %cst_37 = arith.constant dense<0.000000e+00> : vector<128x32xf32>
    %68 = tpu.matmul %6, %67, %cst_37 {dimension_numbers = #tpu.dot_dimension_numbers<[0], [0], [1], [1], [0, 1, 1, 1], [], []>} : vector<64x128xf32>, vector<64x32xf32>, vector<128x32xf32> -> vector<128x32xf32>
    %c0_38 = arith.constant 0 : index
    %c0_39 = arith.constant 0 : index
    %69 = vector.load %arg7[%c0_38, %c0_39] : memref<4x32xf32, #tpu.memory_space<vmem>>, vector<4x32xf32>
    %cst_40 = arith.constant dense<0.000000e+00> : vector<128x32xf32>
    %70 = tpu.matmul %54, %69, %cst_40 {dimension_numbers = #tpu.dot_dimension_numbers<[0], [0], [1], [1], [0, 1, 1, 1], [], []>} : vector<4x128xf32>, vector<4x32xf32>, vector<128x32xf32> -> vector<128x32xf32>
    %c0_41 = arith.constant 0 : index
    %c0_42 = arith.constant 0 : index
    %71 = vector.load %arg13[%c0_41, %c0_42] : memref<128x32xf32, #tpu.memory_space<vmem>>, vector<128x32xf32>
    %72 = arith.mulf %70, %71 : vector<128x32xf32>
    %73 = arith.addf %72, %68 : vector<128x32xf32>
    %c0_43 = arith.constant 0 : index
    %c0_44 = arith.constant 0 : index
    %74 = vector.load %arg13[%c0_43, %c0_44] : memref<128x32xf32, #tpu.memory_space<vmem>>, vector<128x32xf32>
    tpu.vector_store %arg13[%c0_43, %c0_44], %73 {strides = array<i32>} : memref<128x32xf32, #tpu.memory_space<vmem>>, vector<128x32xf32>,
    %c3_i32 = arith.constant 3 : i32
    %75 = arith.cmpi eq, %arg1, %c3_i32 : i32
    %76 = arith.extui %75 : i1 to i32
    %c0_i32_45 = arith.constant 0 : i32
    %77 = arith.cmpi ne, %76, %c0_i32_45 : i32
    scf.if %77 {
      %c0_46 = arith.constant 0 : index
      %c0_47 = arith.constant 0 : index
      %78 = vector.load %arg12[%c0_46, %c0_47] : memref<4x128xf32, #tpu.memory_space<vmem>>, vector<4x128xf32>
      %cst_48 = arith.constant 1.000000e-10 : f32
      %79 = vector.broadcast %cst_48 : f32 to vector<4x128xf32>
      %80 = arith.addf %78, %79 : vector<4x128xf32>
      %81 = tpu.reciprocal %80 : vector<4x128xf32> -> vector<4x128xf32>
      %c0_49 = arith.constant 0 : index
      %c0_50 = arith.constant 0 : index
      %82 = vector.load %arg7[%c0_49, %c0_50] : memref<4x32xf32, #tpu.memory_space<vmem>>, vector<4x32xf32>
      %cst_51 = arith.constant dense<0.000000e+00> : vector<128x32xf32>
      %83 = tpu.matmul %81, %82, %cst_51 {dimension_numbers = #tpu.dot_dimension_numbers<[0], [0], [1], [1], [0, 1, 1, 1], [], []>} : vector<4x128xf32>, vector<4x32xf32>, vector<128x32xf32> -> vector<128x32xf32>
      %c0_52 = arith.constant 0 : index
      %c0_53 = arith.constant 0 : index
      %84 = vector.load %arg13[%c0_52, %c0_53] : memref<128x32xf32, #tpu.memory_space<vmem>>, vector<128x32xf32>
      %85 = arith.mulf %84, %83 : vector<128x32xf32>
      %c0_54 = arith.constant 0 : index
      %c0_55 = arith.constant 0 : index
      %86 = vector.load %arg8[%c0_54, %c0_55] : memref<32x32xf32, #tpu.memory_space<vmem>>, vector<32x32xf32>
      %cst_56 = arith.constant dense<0.000000e+00> : vector<128x32xf32>
      %87 = tpu.matmul %85, %86, %cst_56 {dimension_numbers = #tpu.dot_dimension_numbers<[1], [0], [0], [1], [0, 0, 1, 1], [], []>} : vector<128x32xf32>, vector<32x32xf32>, vector<128x32xf32> -> vector<128x32xf32>
      %c0_57 = arith.constant 0 : index
      %c0_58 = arith.constant 0 : index
      %88 = vector.load %arg9[%c0_57, %c0_58] : memref<1x32xf32, #tpu.memory_space<vmem>>, vector<1x32xf32>
      %89 = vector.broadcast %88 : vector<1x32xf32> to vector<128x32xf32>
      %90 = arith.addf %87, %89 : vector<128x32xf32>
      %c0_59 = arith.constant 0 : index
      %c0_60 = arith.constant 0 : index
      %91 = vector.load %arg10[%c0_59, %c0_60] : memref<128x32xf32, #tpu.memory_space<vmem>>, vector<128x32xf32>
      tpu.vector_store %arg10[%c0_59, %c0_60], %90 {strides = array<i32>} : memref<128x32xf32, #tpu.memory_space<vmem>>, vector<128x32xf32>,
    } else {
    }
    return
  }
  func.func @transform_0(%arg0: i32, %arg1: i32) -> (i32, i32) {
    %c0_i32 = arith.constant 0 : i32
    %c0_i32_0 = arith.constant 0 : i32
    %c0_i32_1 = arith.constant 0 : i32
    return %c0_i32, %c0_i32_0 : i32, i32
  }
  func.func @transform_1(%arg0: i32, %arg1: i32) -> (i32, i32) {
    %c0_i32 = arith.constant 0 : i32
    %c0_i32_0 = arith.constant 0 : i32
    return %arg0, %c0_i32 : i32, i32
  }
  func.func @transform_2(%arg0: i32, %arg1: i32) -> (i32, i32) {
    %c0_i32 = arith.constant 0 : i32
    %c0_i32_0 = arith.constant 0 : i32
    %c0_i32_1 = arith.constant 0 : i32
    return %c0_i32, %c0_i32_0 : i32, i32
  }
  func.func @transform_3(%arg0: i32, %arg1: i32) -> (i32, i32) {
    %c0_i32 = arith.constant 0 : i32
    %c0_i32_0 = arith.constant 0 : i32
    return %arg1, %c0_i32 : i32, i32
  }
  func.func @transform_4(%arg0: i32, %arg1: i32) -> (i32, i32) {
    %c0_i32 = arith.constant 0 : i32
    return %arg1, %arg0 : i32, i32
  }
  func.func @transform_5(%arg0: i32, %arg1: i32) -> (i32, i32) {
    %c0_i32 = arith.constant 0 : i32
    %c0_i32_0 = arith.constant 0 : i32
    %c0_i32_1 = arith.constant 0 : i32
    return %c0_i32, %c0_i32_0 : i32, i32
  }
  func.func @transform_6(%arg0: i32, %arg1: i32) -> (i32, i32) {
    %c0_i32 = arith.constant 0 : i32
    %c0_i32_0 = arith.constant 0 : i32
    %c0_i32_1 = arith.constant 0 : i32
    return %c0_i32, %c0_i32_0 : i32, i32
  }
  func.func @transform_7(%arg0: i32, %arg1: i32) -> (i32, i32) {
    %c0_i32 = arith.constant 0 : i32
    %c0_i32_0 = arith.constant 0 : i32
    %c0_i32_1 = arith.constant 0 : i32
    return %c0_i32, %c0_i32_0 : i32, i32
  }
  func.func @transform_8(%arg0: i32, %arg1: i32) -> (i32, i32) {
    %c0_i32 = arith.constant 0 : i32
    %c0_i32_0 = arith.constant 0 : i32
    return %arg0, %c0_i32 : i32, i32
  }
}

</mosaic_0001>

<llo_original>
// kernel: tpu_custom_call.1
$region0: #{tpu_custom_call.1}
  #allocation0 [shape = 'u32[]', space=smem, size = 0x4, offset = 0x4, fixed_abs, tag = 'smem constant byte address 0x4 - core index']
  #allocation1 [shape = 'u32[144,128]{1,0:T(1,128)}', space=vmem, size = 0x12000, scoped, tag = 'internal scratch']
  #allocation2 [shape = 'f32[4,128]{1,0:T(4,128)}', space=vmem, size = 0x800, scoped, tag = 'scratch operand']
  #allocation3 [shape = 'f32[4,128]{1,0:T(4,128)}', space=vmem, size = 0x800, scoped, tag = 'scratch operand']
  #allocation4 [shape = 'f32[128,32]{1,0:T(8,128)}', space=vmem, size = 0x10000, scoped, tag = 'scratch operand']
  %s0 = inlined_call_operand.vmem [shape: f32[256,4], index: 0, kind: input, shape index: {}]
  %s1 = inlined_call_operand.vmem [shape: f32[256,4], index: 1, kind: input, shape index: {}]
  %s2 = inlined_call_operand.vmem [shape: f32[256,32], index: 2, kind: input, shape index: {}]
  %s3 = inlined_call_operand.vmem [shape: s8[256,256], index: 3, kind: input, shape index: {}]
  %s4 = inlined_call_operand.vmem [shape: s8[256,256], index: 4, kind: input, shape index: {}]
  %s5 = inlined_call_operand.vmem [shape: f32[4,32], index: 5, kind: input, shape index: {}]
  %s6 = inlined_call_operand.vmem [shape: f32[32,32], index: 6, kind: input, shape index: {}]
  %s7 = inlined_call_operand.vmem [shape: f32[1,32], index: 7, kind: input, shape index: {}]
  %s8 = inlined_call_operand.vmem [shape: f32[256,32], index: 8, kind: output, shape index: {}]
  %s9 = sld [smem:[#allocation0]]
  $region111: #{tpu_custom_call.1} parent=0
    _
  %s11 = ssub.s32 1, %s9
  %s12 = scalar_select 0, %s11, %s9
  $region1: #{tpu_custom_call.1} parent=0
    #allocation5 [shape = 'u8[16384]{0}', space=vmem, size = 0x4000, scoped, tag = 'input window, operand 4']
    loop: start=0, step=1, limit=10
    $region2: #{tpu_custom_call.1} parent=1 // loop_pre_header
      _
    $region3: #{tpu_custom_call.1} parent=1 // loop_header
      %s14 = sphi 0, %s18
      %p15 = scmp.ge.s32.totalorder %s14, 10
      %s21 = sphi 0, %s33
      %s22 = sphi 0, %s29
      %s23 = sphi 0, %s21
      %s24 = sphi 0, %s22
      %s25 = sphi 0, %s23
      %s26 = sphi 0, %s24
      %s34 = sphi 0, %s34
      %s36 = sphi 0, %s34
      %s37 = sphi 0, %s36
      %s51 = sphi 0, %s37
      %s57 = sphi 0, %s59
      %s60 = sphi 0, %s57
      %s61 = sphi 0, %s60
      %s77 = sphi 0, %s61
      %s81 = sphi 0, %s81
      %s83 = sphi 0, %s81
      %s84 = sphi 0, %s83
      %s98 = sphi 0, %s84
      %s104 = sphi 0, %s106
      %s107 = sphi 0, %s104
      %s108 = sphi 0, %s107
      %s124 = sphi 0, %s108
      %s132 = sphi 0, %s134
      %s135 = sphi 0, %s132
      %s136 = sphi 0, %s135
      %s152 = sphi 0, %s136
      %s156 = sphi 0, %s156
      %s158 = sphi 0, %s156
      %s159 = sphi 0, %s158
      %s173 = sphi 0, %s159
      %s177 = sphi 0, %s177
      %s179 = sphi 0, %s177
      %s180 = sphi 0, %s179
      %s194 = sphi 0, %s180
      %s198 = sphi 0, %s198
      %s200 = sphi 0, %s198
      %s201 = sphi 0, %s200
      %s215 = sphi 0, %s201
      %s221 = sphi 0, %s223
      %s224 = sphi 0, %s221
      %s225 = sphi 0, %s224
      %s241 = sphi 0, %s225
    $region4: #{tpu_custom_call.1} parent=1 // loop_header_branch
      %17 = sbr.rel (%p15) target = $region8
    $region5: #{tpu_custom_call.1} parent=1 // loop_body
      %s19 = ssub.s32 %s14, 1
      %s20 = ssub.s32 %s14, 2
      %s27 = sadd.s32 1, %s22
      %p28 = scmp.ge.s32.totalorder %s27, 4
      %s29 = scalar_select %p28, 0, %s27
      %s30 = sadd.s32 1, %s21
      %s31 = scalar_select %p28, %s30, %s21
      %p32 = scmp.ge.s32.totalorder %s31, 2
      %s33 = scalar_select %p32, 0, %s31
      %s35 = sadd.s32 %s34, 1
      %p38 = scmp.eq.s32.totalorder %s14, 7
      %p39 = scmp.ne.s32.totalorder %s34, %s36
      %p40 = scmp.eq.s32.totalorder %s14, 0
      %p41 = por %p39, %p40
      %p42 = scmp.ne.s32.totalorder %s34, %s36
      %p43 = scmp.eq.s32.totalorder %s19, 7
      %p44 = por %p42, %p43
      %p45 = scmp.ne.s32.totalorder %s36, %s37
      %p46 = scmp.eq.s32.totalorder %s19, 0
      %p47 = por %p45, %p46
      %p48 = scmp.ne.s32.totalorder %s36, %s37
      %p49 = scmp.eq.s32.totalorder %s20, 7
      %p50 = por %p48, %p49
      %p52 = scmp.ne.s32.totalorder %s37, %s51
      %p53 = scmp.eq.s32.totalorder %s20, 0
      %p54 = por %p52, %p53
      %s55 = ssub.s32 %s21, %s33
      %p56 = scmp.eq.s32.totalorder %s55, 0
      %s58 = sadd.s32 %s57, 1
      %s59 = scalar_select %p56, %s57, %s58
      %p62 = pneg %p56
      %p63 = scmp.eq.s32.totalorder %s14, 7
      %p64 = por %p62, %p63
      %p65 = scmp.ne.s32.totalorder %s57, %s60
      %p66 = scmp.eq.s32.totalorder %s14, 0
      %p67 = por %p65, %p66
      %p68 = scmp.ne.s32.totalorder %s57, %s60
      %p69 = scmp.eq.s32.totalorder %s19, 7
      %p70 = por %p68, %p69
      %p71 = scmp.ne.s32.totalorder %s60, %s61
      %p72 = scmp.eq.s32.totalorder %s19, 0
      %p73 = por %p71, %p72
      %p74 = scmp.ne.s32.totalorder %s60, %s61
      %p75 = scmp.eq.s32.totalorder %s20, 7
      %p76 = por %p74, %p75
      %p78 = scmp.ne.s32.totalorder %s61, %s77
      %p79 = scmp.eq.s32.totalorder %s20, 0
      %p80 = por %p78, %p79
      %s82 = sadd.s32 %s81, 1
      %p85 = scmp.eq.s32.totalorder %s14, 7
      %p86 = scmp.ne.s32.totalorder %s81, %s83
      %p87 = scmp.eq.s32.totalorder %s14, 0
      %p88 = por %p86, %p87
      %p89 = scmp.ne.s32.totalorder %s81, %s83
      %p90 = scmp.eq.s32.totalorder %s19, 7
      %p91 = por %p89, %p90
      %p92 = scmp.ne.s32.totalorder %s83, %s84
      %p93 = scmp.eq.s32.totalorder %s19, 0
      %p94 = por %p92, %p93
      %p95 = scmp.ne.s32.totalorder %s83, %s84
      %p96 = scmp.eq.s32.totalorder %s20, 7
      %p97 = por %p95, %p96
      %p99 = scmp.ne.s32.totalorder %s84, %s98
      %p100 = scmp.eq.s32.totalorder %s20, 0
      %p101 = por %p99, %p100
      %s102 = ssub.s32 %s22, %s29
      %p103 = scmp.eq.s32.totalorder %s102, 0
      %s105 = sadd.s32 %s104, 1
      %s106 = scalar_select %p103, %s104, %s105
      %p109 = pneg %p103
      %p110 = scmp.eq.s32.totalorder %s14, 7
      %p111 = por %p109, %p110
      %p112 = scmp.ne.s32.totalorder %s104, %s107
      %p113 = scmp.eq.s32.totalorder %s14, 0
      %p114 = por %p112, %p113
      %p115 = scmp.ne.s32.totalorder %s104, %s107
      %p116 = scmp.eq.s32.totalorder %s19, 7
      %p117 = por %p115, %p116
      %p118 = scmp.ne.s32.totalorder %s107, %s108
      %p119 = scmp.eq.s32.totalorder %s19, 0
      %p120 = por %p118, %p119
      %p121 = scmp.ne.s32.totalorder %s107, %s108
      %p122 = scmp.eq.s32.totalorder %s20, 7
      %p123 = por %p121, %p122
      %p125 = scmp.ne.s32.totalorder %s108, %s124
      %p126 = scmp.eq.s32.totalorder %s20, 0
      %p127 = por %p125, %p126
      %s128 = ssub.s32 %s22, %s29
      %s129 = ssub.s32 %s21, %s33
      %s130 = sor.u32 %s128, %s129
      %p131 = scmp.eq.s32.totalorder %s130, 0
      %s133 = sadd.s32 %s132, 1
      %s134 = scalar_select %p131, %s132, %s133
      %p137 = pneg %p131
      %p138 = scmp.eq.s32.totalorder %s14, 7
      %p139 = por %p137, %p138
      %p140 = scmp.ne.s32.totalorder %s132, %s135
      %p141 = scmp.eq.s32.totalorder %s14, 0
      %p142 = por %p140, %p141
      %p143 = scmp.ne.s32.totalorder %s132, %s135
      %p144 = scmp.eq.s32.totalorder %s19, 7
      %p145 = por %p143, %p144
      %p146 = scmp.ne.s32.totalorder %s135, %s136
      %p147 = scmp.eq.s32.totalorder %s19, 0
      %p148 = por %p146, %p147
      %p149 = scmp.ne.s32.totalorder %s135, %s136
      %p150 = scmp.eq.s32.totalorder %s20, 7
      %p151 = por %p149, %p150
      %p153 = scmp.ne.s32.totalorder %s136, %s152
      %p154 = scmp.eq.s32.totalorder %s20, 0
      %p155 = por %p153, %p154
      %s157 = sadd.s32 %s156, 1
      %p160 = scmp.eq.s32.totalorder %s14, 7
      %p161 = scmp.ne.s32.totalorder %s156, %s158
      %p162 = scmp.eq.s32.totalorder %s14, 0
      %p163 = por %p161, %p162
      %p164 = scmp.ne.s32.totalorder %s156, %s158
      %p165 = scmp.eq.s32.totalorder %s19, 7
      %p166 = por %p164, %p165
      %p167 = scmp.ne.s32.totalorder %s158, %s159
      %p168 = scmp.eq.s32.totalorder %s19, 0
      %p169 = por %p167, %p168
      %p170 = scmp.ne.s32.totalorder %s158, %s159
      %p171 = scmp.eq.s32.totalorder %s20, 7
      %p172 = por %p170, %p171
      %p174 = scmp.ne.s32.totalorder %s159, %s173
      %p175 = scmp.eq.s32.totalorder %s20, 0
      %p176 = por %p174, %p175
      %s178 = sadd.s32 %s177, 1
      %p181 = scmp.eq.s32.totalorder %s14, 7
      %p182 = scmp.ne.s32.totalorder %s177, %s179
      %p183 = scmp.eq.s32.totalorder %s14, 0
      %p184 = por %p182, %p183
      %p185 = scmp.ne.s32.totalorder %s177, %s179
      %p186 = scmp.eq.s32.totalorder %s19, 7
      %p187 = por %p185, %p186
      %p188 = scmp.ne.s32.totalorder %s179, %s180
      %p189 = scmp.eq.s32.totalorder %s19, 0
      %p190 = por %p188, %p189
      %p191 = scmp.ne.s32.totalorder %s179, %s180
      %p192 = scmp.eq.s32.totalorder %s20, 7
      %p193 = por %p191, %p192
      %p195 = scmp.ne.s32.totalorder %s180, %s194
      %p196 = scmp.eq.s32.totalorder %s20, 0
      %p197 = por %p195, %p196
      %s199 = sadd.s32 %s198, 1
      %p202 = scmp.eq.s32.totalorder %s14, 7
      %p203 = scmp.ne.s32.totalorder %s198, %s200
      %p204 = scmp.eq.s32.totalorder %s14, 0
      %p205 = por %p203, %p204
      %p206 = scmp.ne.s32.totalorder %s198, %s200
      %p207 = scmp.eq.s32.totalorder %s19, 7
      %p208 = por %p206, %p207
      %p209 = scmp.ne.s32.totalorder %s200, %s201
      %p210 = scmp.eq.s32.totalorder %s19, 0
      %p211 = por %p209, %p210
      %p212 = scmp.ne.s32.totalorder %s200, %s201
      %p213 = scmp.eq.s32.totalorder %s20, 7
      %p214 = por %p212, %p213
      %p216 = scmp.ne.s32.totalorder %s201, %s215
      %p217 = scmp.eq.s32.totalorder %s20, 0
      %p218 = por %p216, %p217
      %s219 = ssub.s32 %s21, %s33
      %p220 = scmp.eq.s32.totalorder %s219, 0
      %s222 = sadd.s32 %s221, 1
      %s223 = scalar_select %p220, %s221, %s222
      %p226 = pneg %p220
      %p227 = scmp.eq.s32.totalorder %s14, 7
      %p228 = por %p226, %p227
      %p229 = scmp.ne.s32.totalorder %s221, %s224
      %p230 = scmp.eq.s32.totalorder %s14, 0
      %p231 = por %p229, %p230
      %p232 = scmp.ne.s32.totalorder %s221, %s224
      %p233 = scmp.eq.s32.totalorder %s19, 7
      %p234 = por %p232, %p233
      %p235 = scmp.ne.s32.totalorder %s224, %s225
      %p236 = scmp.eq.s32.totalorder %s19, 0
      %p237 = por %p235, %p236
      %p238 = scmp.ne.s32.totalorder %s224, %s225
      %p239 = scmp.eq.s32.totalorder %s20, 7
      %p240 = por %p238, %p239
      %p242 = scmp.ne.s32.totalorder %s225, %s241
      %p243 = scmp.eq.s32.totalorder %s20, 0
      %p244 = por %p242, %p243
      %p245 = scmp.le.s32.totalorder 1, %s14
      %p246 = scmp.lt.s32.totalorder %s14, 9
      %p247 = pnand %p245, %p246
      %p248 = pneg %p247
      // Predicated region
      $region9: #{tpu_custom_call.1} parent=5 // pred_check
        _
      $region10: #{tpu_custom_call.1} parent=5 // pred_check_branch
        %250 = sbr.rel (%p247) target = $region12
      $region11: #{tpu_custom_call.1} parent=5 // pred_region
        %s251 = ssub.s32 %s14, 1
        // Predicated region
        $region13: #{tpu_custom_call.1} parent=11 // pred_check
          %p252 = pneg %p47
        $region14: #{tpu_custom_call.1} parent=11 // pred_check_branch
          %254 = sbr.rel (%p252) target = $region16
        $region15: #{tpu_custom_call.1} parent=11 // pred_region
          _
        $region16: #{tpu_custom_call.1} parent=11 // pred_fallthru
          _
        // Predicated region
        $region17: #{tpu_custom_call.1} parent=11 // pred_check
          %p255 = pneg %p94
        $region18: #{tpu_custom_call.1} parent=11 // pred_check_branch
          %257 = sbr.rel (%p255) target = $region20
        $region19: #{tpu_custom_call.1} parent=11 // pred_region
          _
        $region20: #{tpu_custom_call.1} parent=11 // pred_fallthru
          _
        // Predicated region
        $region21: #{tpu_custom_call.1} parent=11 // pred_check
          %p258 = pneg %p169
        $region22: #{tpu_custom_call.1} parent=11 // pred_check_branch
          %260 = sbr.rel (%p258) target = $region24
        $region23: #{tpu_custom_call.1} parent=11 // pred_region
          _
        $region24: #{tpu_custom_call.1} parent=11 // pred_fallthru
          _
        // Predicated region
        $region25: #{tpu_custom_call.1} parent=11 // pred_check
          %p261 = pneg %p190
        $region26: #{tpu_custom_call.1} parent=11 // pred_check_branch
          %263 = sbr.rel (%p261) target = $region28
        $region27: #{tpu_custom_call.1} parent=11 // pred_region
          _
        $region28: #{tpu_custom_call.1} parent=11 // pred_fallthru
          _
        // Predicated region
        $region29: #{tpu_custom_call.1} parent=11 // pred_check
          %p264 = pneg %p211
        $region30: #{tpu_custom_call.1} parent=11 // pred_check_branch
          %266 = sbr.rel (%p264) target = $region32
        $region31: #{tpu_custom_call.1} parent=11 // pred_region
          _
        $region32: #{tpu_custom_call.1} parent=11 // pred_fallthru
          _
      $region12: #{tpu_custom_call.1} parent=5 // pred_fallthru
        _
      %p267 = scmp.lt.s32.totalorder %s14, 8
      // Predicated region
      $region33: #{tpu_custom_call.1} parent=5 // pred_check
        %p268 = pneg %p267
      $region34: #{tpu_custom_call.1} parent=5 // pred_check_branch
        %270 = sbr.rel (%p268) target = $region36
      $region35: #{tpu_custom_call.1} parent=5 // pred_region
        // Predicated region
        $region37: #{tpu_custom_call.1} parent=35 // pred_check
          %p271 = pneg %p67
        $region38: #{tpu_custom_call.1} parent=35 // pred_check_branch
          %273 = sbr.rel (%p271) target = $region40
        $region39: #{tpu_custom_call.1} parent=35 // pred_region
          %s274 = smul.u32 16, %s21
          %p275 = scmp.lt.s32.totalorder %s274, 31
          %s276 = scalar_select %p275, %s274, 31
          %s277 = smul.addr %s276, 8
          %s278 = scalar_lea.vmem %s1, %s277
          %s279 = smul.u32 16, %s21
        $region40: #{tpu_custom_call.1} parent=35 // pred_fallthru
          _
        // Predicated region
        $region41: #{tpu_custom_call.1} parent=35 // pred_check
          %p280 = pneg %p114
        $region42: #{tpu_custom_call.1} parent=35 // pred_check_branch
          %282 = sbr.rel (%p280) target = $region44
        $region43: #{tpu_custom_call.1} parent=35 // pred_region
          %s283 = smul.u32 2, %s22
          %p284 = scmp.lt.s32.totalorder %s283, 7
          %s285 = scalar_select %p284, %s283, 7
          %s286 = smul.addr %s285, 2
          %s287 = smul.addr %s286, 8
          %s288 = scalar_lea.vmem %s3, %s287
          %s289 = smul.u32 2, %s22
        $region44: #{tpu_custom_call.1} parent=35 // pred_fallthru
          _
        // Predicated region
        $region45: #{tpu_custom_call.1} parent=35 // pred_check
          %p290 = pneg %p142
        $region46: #{tpu_custom_call.1} parent=35 // pred_check_branch
          %292 = sbr.rel (%p290) target = $region48
        $region47: #{tpu_custom_call.1} parent=35 // pred_region
          %s293 = sand.u32 %s132, 1
          %s294 = sand.u32 %s132, 1
          %s295 = smul.addr %s294, 16
          %s296 = scalar_lea.vmem [#allocation5], %s295
          %s297 = smul.u32 2, %s22
          %s298 = smul.addr %s297, 2
          %s299 = sadd.s32 %s21, %s298
          %s300 = smul.addr %s299, 8
          %s301 = scalar_lea.vmem %s4, %s300
          // Predicated region
          $region49: #{tpu_custom_call.1} parent=47 // pred_check
            _
          $region50: #{tpu_custom_call.1} parent=47 // pred_check_branch
            %303 = sbr.rel (0) target = $region52
          $region51: #{tpu_custom_call.1} parent=47 // pred_region
            // Predicated region
            $region53: #{tpu_custom_call.1} parent=51 // pred_check
              _
            $region54: #{tpu_custom_call.1} parent=51 // pred_check_branch
              %305 = sbr.rel (0) target = $region56
            $region55: #{tpu_custom_call.1} parent=51 // pred_region
              // Predicated region
              $region68: #{tpu_custom_call.1} parent=55 // pred_check
                _
              $region69: #{tpu_custom_call.1} parent=55 // pred_check_branch
                %323 = sbr.rel (0) target = $region71
              $region70: #{tpu_custom_call.1} parent=55 // pred_region
                loop: start=0, step=1, limit=1
                $region72: #{tpu_custom_call.1} parent=70 // loop_pre_header
                  _
                $region73: #{tpu_custom_call.1} parent=70 // loop_header
                  %s325 = sphi 0, %s329
                  %p326 = scmp.ge.s32.totalorder %s325, 1
                  %s330 = sphi %s301, %s301
                  %s331 = sphi %s296, %s296
                $region74: #{tpu_custom_call.1} parent=70 // loop_header_branch
                  %328 = sbr.rel (%p326) target = $region78
                $region75: #{tpu_custom_call.1} parent=70 // loop_body
                  %v332 = vld [vmem:[%s330] sm:$0xff]
                  %333 = vst [vmem:[%s331] sm:$0xff] %v332
                  %v334 = vld [vmem:[%s330 + $0x10] sm:$0xff]
                  %335 = vst [vmem:[%s331 + $0x8] sm:$0xff] %v334
                $region76: #{tpu_custom_call.1} parent=70 // loop_footer
                  %s329 = sadd.s32 1, %s325
                $region77: #{tpu_custom_call.1} parent=70 // loop_footer_branch
                  %324 = sbr.rel target = $region73
                $region78: #{tpu_custom_call.1} parent=70 // loop_exit
                  _
              $region71: #{tpu_custom_call.1} parent=55 // pred_fallthru
                _
              // Predicated region
              $region79: #{tpu_custom_call.1} parent=55 // pred_check
                _
              $region80: #{tpu_custom_call.1} parent=55 // pred_check_branch
                %337 = sbr.rel target = $region82
              $region81: #{tpu_custom_call.1} parent=55 // pred_region
                _
              $region82: #{tpu_custom_call.1} parent=55 // pred_fallthru
                _
            $region56: #{tpu_custom_call.1} parent=51 // pred_fallthru
              _
            // Predicated region
            $region57: #{tpu_custom_call.1} parent=51 // pred_check
              _
            $region58: #{tpu_custom_call.1} parent=51 // pred_check_branch
              %307 = sbr.rel target = $region60
            $region59: #{tpu_custom_call.1} parent=51 // pred_region
              %s309 = ssub.s32 256, 1
              loop: start=0, step=1, limit=1
              $region61: #{tpu_custom_call.1} parent=59 // loop_pre_header
                _
              $region62: #{tpu_custom_call.1} parent=59 // loop_header
                %s311 = sphi 0, %s315
                %p312 = scmp.ge.s32.totalorder %s311, 1
                %s316 = sphi %s301, %s301
                %s317 = sphi %s296, %s296
              $region63: #{tpu_custom_call.1} parent=59 // loop_header_branch
                %314 = sbr.rel (%p312) target = $region67
              $region64: #{tpu_custom_call.1} parent=59 // loop_body
                %v318 = vld [vmem:[%s316] sm:%s309]
                %319 = vst [vmem:[%s317] sm:%s309] %v318
                %v320 = vld [vmem:[%s316 + $0x10] sm:%s309]
                %321 = vst [vmem:[%s317 + $0x8] sm:%s309] %v320
              $region65: #{tpu_custom_call.1} parent=59 // loop_footer
                %s315 = sadd.s32 1, %s311
              $region66: #{tpu_custom_call.1} parent=59 // loop_footer_branch
                %310 = sbr.rel target = $region62
              $region67: #{tpu_custom_call.1} parent=59 // loop_exit
                _
            $region60: #{tpu_custom_call.1} parent=51 // pred_fallthru
              _
          $region52: #{tpu_custom_call.1} parent=47 // pred_fallthru
            _
          %338 = vnop
        $region48: #{tpu_custom_call.1} parent=35 // pred_fallthru
          _
      $region36: #{tpu_custom_call.1} parent=5 // pred_fallthru
        _
      %p339 = scmp.le.s32.totalorder 1, %s14
      %p340 = scmp.lt.s32.totalorder %s14, 9
      %p341 = pnand %p339, %p340
      %p342 = pneg %p341
      // Predicated region
      $region83: #{tpu_custom_call.1} parent=5 // pred_check
        _
      $region84: #{tpu_custom_call.1} parent=5 // pred_check_branch
        %344 = sbr.rel (%p341) target = $region86
      $region85: #{tpu_custom_call.1} parent=5 // pred_region
        %s345 = ssub.s32 %s14, 1
        %s346 = sand.u32 %s135, 1
        %s347 = sand.u32 %s135, 1
        %s348 = smul.addr %s347, 16
        %s349 = scalar_lea.vmem [#allocation5], %s348
        // Predicated region
        $region87: #{tpu_custom_call.1} parent=85 // pred_check
          %p350 = pneg %p148
        $region88: #{tpu_custom_call.1} parent=85 // pred_check_branch
          %352 = sbr.rel (%p350) target = $region90
        $region89: #{tpu_custom_call.1} parent=85 // pred_region
          _
        $region90: #{tpu_custom_call.1} parent=85 // pred_fallthru
          _
        %p353 = pneg %p47
        %p354 = pneg %p44
        %s355 = smul.u32 16, %s23
        %p356 = scmp.lt.s32.totalorder %s355, 31
        %s357 = scalar_select %p356, %s355, 31
        %s358 = smul.addr %s357, 8
        %s359 = scalar_lea.vmem %s1, %s358
        %p360 = pneg %p73
        %p361 = pneg %p70
        %p362 = pneg %p94
        %p363 = pneg %p91
        %s364 = smul.u32 2, %s24
        %p365 = scmp.lt.s32.totalorder %s364, 7
        %s366 = scalar_select %p365, %s364, 7
        %s367 = smul.addr %s366, 2
        %s368 = smul.addr %s367, 8
        %s369 = scalar_lea.vmem %s3, %s368
        %p370 = pneg %p120
        %p371 = pneg %p117
        %s372 = sand.u32 %s135, 1
        %s373 = sand.u32 %s135, 1
        %s374 = smul.addr %s373, 16
        %s375 = scalar_lea.vmem [#allocation5], %s374
        %p376 = pneg %p148
        %p377 = pneg %p145
        %p378 = pneg %p169
        %p379 = pneg %p166
        %p380 = pneg %p190
        %p381 = pneg %p187
        %p382 = pneg %p211
        %p383 = pneg %p208
        %p384 = pneg %p237
        %p385 = pneg %p234
        %s386 = smul.u32 16, %s23
        %p387 = scmp.lt.s32.totalorder %s386, 31
        %s388 = scalar_select %p387, %s386, 31
        %s389 = smul.addr %s388, 8
        %s390 = scalar_lea.vmem %s8, %s389
        %s391 = smul.u32 16, %s23
        %p392 = scmp.lt.s32.totalorder %s391, 31
        %s393 = scalar_select %p392, %s391, 31
        %s394 = smul.addr %s393, 8
        %s395 = scalar_lea.vmem %s1, %s394
        %s396 = smul.u32 16, %s23
        %s397 = smul.u32 2, %s24
        %p398 = scmp.lt.s32.totalorder %s397, 7
        %s399 = scalar_select %p398, %s397, 7
        %s400 = smul.addr %s399, 2
        %s401 = smul.addr %s400, 8
        %s402 = scalar_lea.vmem %s3, %s401
        %s403 = smul.u32 2, %s24
        %s404 = smul.u32 2, %s24
        %s405 = smul.u32 16, %s23
        %p406 = scmp.lt.s32.totalorder %s405, 31
        %s407 = scalar_select %p406, %s405, 31
        %s408 = smul.addr %s407, 8
        %s409 = scalar_lea.vmem %s8, %s408
        %s410 = smul.u32 16, %s23
        %p411 = scmp.eq.s32.totalorder %s24, 0
        // Predicated region
        $region91: #{tpu_custom_call.1} parent=85 // pred_check
          %p412 = pneg %p411
        $region92: #{tpu_custom_call.1} parent=85 // pred_check_branch
          %414 = sbr.rel (%p412) target = $region94
        $region93: #{tpu_custom_call.1} parent=85 // pred_region
          %415 = vst [vmem:[#allocation2] sm:$0xf] 0.0
          %416 = vst [vmem:[#allocation3] sm:$0xf] 0.0
          %vm417 = vcmask 261120
          %418 = vst.msk [vmem:[#allocation4] sm:$0xff] %vm417, 0.0
          %419 = vst.msk [vmem:[#allocation4 + $0x8] sm:$0xff] %vm417, 0.0
          %420 = vst.msk [vmem:[#allocation4 + $0x10] sm:$0xff] %vm417, 0.0
          %421 = vst.msk [vmem:[#allocation4 + $0x18] sm:$0xff] %vm417, 0.0
          %422 = vst.msk [vmem:[#allocation4 + $0x20] sm:$0xff] %vm417, 0.0
          %423 = vst.msk [vmem:[#allocation4 + $0x28] sm:$0xff] %vm417, 0.0
          %424 = vst.msk [vmem:[#allocation4 + $0x30] sm:$0xff] %vm417, 0.0
          %425 = vst.msk [vmem:[#allocation4 + $0x38] sm:$0xff] %vm417, 0.0
          %426 = vst.msk [vmem:[#allocation4 + $0x40] sm:$0xff] %vm417, 0.0
          %427 = vst.msk [vmem:[#allocation4 + $0x48] sm:$0xff] %vm417, 0.0
          %428 = vst.msk [vmem:[#allocation4 + $0x50] sm:$0xff] %vm417, 0.0
          %429 = vst.msk [vmem:[#allocation4 + $0x58] sm:$0xff] %vm417, 0.0
          %430 = vst.msk [vmem:[#allocation4 + $0x60] sm:$0xff] %vm417, 0.0
          %431 = vst.msk [vmem:[#allocation4 + $0x68] sm:$0xff] %vm417, 0.0
          %432 = vst.msk [vmem:[#allocation4 + $0x70] sm:$0xff] %vm417, 0.0
          %433 = vst.msk [vmem:[#allocation4 + $0x78] sm:$0xff] %vm417, 0.0
        $region94: #{tpu_custom_call.1} parent=85 // pred_fallthru
          _
        %v434 = vld [vmem:[%s402] sm:$0xff]
        %v435 = vld [vmem:[%s402 + $0x8] sm:$0xff]
        %v436 = vld [vmem:[%s402 + $0x10] sm:$0xff]
        %v437 = vld [vmem:[%s402 + $0x18] sm:$0xff]
        %v438 = vunpack.c.0.s8 %v434
        %v439 = vunpack.c.0.s8 %v435
        %v440 = vunpack.c.1.s8 %v434
        %v441 = vunpack.c.1.s8 %v435
        %v442 = vunpack.c.2.s8 %v434
        %v443 = vunpack.c.2.s8 %v435
        %v444 = vunpack.c.3.s8 %v434
        %v445 = vunpack.c.3.s8 %v435
        %v446 = vunpack.c.0.s8 %v436
        %v447 = vunpack.c.0.s8 %v437
        %v448 = vunpack.c.1.s8 %v436
        %v449 = vunpack.c.1.s8 %v437
        %v450 = vunpack.c.2.s8 %v436
        %v451 = vunpack.c.2.s8 %v437
        %v452 = vunpack.c.3.s8 %v436
        %v453 = vunpack.c.3.s8 %v437
        %v454 = vcvt.s32.f32 %v438
        %v455 = vcvt.s32.f32 %v439
        %v456 = vcvt.s32.f32 %v440
        %v457 = vcvt.s32.f32 %v441
        %v458 = vcvt.s32.f32 %v442
        %v459 = vcvt.s32.f32 %v443
        %v460 = vcvt.s32.f32 %v444
        %v461 = vcvt.s32.f32 %v445
        %v462 = vcvt.s32.f32 %v446
        %v463 = vcvt.s32.f32 %v447
        %v464 = vcvt.s32.f32 %v448
        %v465 = vcvt.s32.f32 %v449
        %v466 = vcvt.s32.f32 %v450
        %v467 = vcvt.s32.f32 %v451
        %v468 = vcvt.s32.f32 %v452
        %v469 = vcvt.s32.f32 %v453
        %v470 = vld [vmem:[%s349] sm:$0xff]
        %v471 = vld [vmem:[%s349 + $0x8] sm:$0xff]
        %v472 = vunpack.c.0.s8 %v470
        %v473 = vunpack.c.1.s8 %v470
        %v474 = vunpack.c.2.s8 %v470
        %v475 = vunpack.c.3.s8 %v470
        %v476 = vunpack.c.0.s8 %v471
        %v477 = vunpack.c.1.s8 %v471
        %v478 = vunpack.c.2.s8 %v471
        %v479 = vunpack.c.3.s8 %v471
        %v480 = vcvt.s32.f32 %v472
        %v481 = vcvt.s32.f32 %v473
        %v482 = vcvt.s32.f32 %v474
        %v483 = vcvt.s32.f32 %v475
        %v484 = vcvt.s32.f32 %v476
        %v485 = vcvt.s32.f32 %v477
        %v486 = vcvt.s32.f32 %v478
        %v487 = vcvt.s32.f32 %v479
        %v488 = vld [vmem:[%s0] sm:$0xff]
        %v489 = vld [vmem:[%s0 + $0x8] sm:$0xff]
        %v490 = vld [vmem:[%s0 + $0x10] sm:$0xff]
        %v491 = vld [vmem:[%s0 + $0x18] sm:$0xff]
        %v492 = vld [vmem:[%s0 + $0x20] sm:$0xff]
        %v493 = vld [vmem:[%s0 + $0x28] sm:$0xff]
        %v494 = vld [vmem:[%s0 + $0x30] sm:$0xff]
        %v495 = vld [vmem:[%s0 + $0x38] sm:$0xff]
        %v496 = vld [vmem:[%s0 + $0x40] sm:$0xff]
        %v497 = vld [vmem:[%s0 + $0x48] sm:$0xff]
        %v498 = vld [vmem:[%s0 + $0x50] sm:$0xff]
        %v499 = vld [vmem:[%s0 + $0x58] sm:$0xff]
        %v500 = vld [vmem:[%s0 + $0x60] sm:$0xff]
        %v501 = vld [vmem:[%s0 + $0x68] sm:$0xff]
        %v502 = vld [vmem:[%s0 + $0x70] sm:$0xff]
        %v503 = vld [vmem:[%s0 + $0x78] sm:$0xff]
        %v504 = vld [vmem:[%s0 + $0x80] sm:$0xff]
        %v505 = vld [vmem:[%s0 + $0x88] sm:$0xff]
        %v506 = vld [vmem:[%s0 + $0x90] sm:$0xff]
        %v507 = vld [vmem:[%s0 + $0x98] sm:$0xff]
        %v508 = vld [vmem:[%s0 + $0xa0] sm:$0xff]
        %v509 = vld [vmem:[%s0 + $0xa8] sm:$0xff]
        %v510 = vld [vmem:[%s0 + $0xb0] sm:$0xff]
        %v511 = vld [vmem:[%s0 + $0xb8] sm:$0xff]
        %v512 = vld [vmem:[%s0 + $0xc0] sm:$0xff]
        %v513 = vld [vmem:[%s0 + $0xc8] sm:$0xff]
        %v514 = vld [vmem:[%s0 + $0xd0] sm:$0xff]
        %v515 = vld [vmem:[%s0 + $0xd8] sm:$0xff]
        %v516 = vld [vmem:[%s0 + $0xe0] sm:$0xff]
        %v517 = vld [vmem:[%s0 + $0xe8] sm:$0xff]
        %v518 = vld [vmem:[%s0 + $0xf0] sm:$0xff]
        %v519 = vld [vmem:[%s0 + $0xf8] sm:$0xff]
        %v520 = vld [vmem:[%s395] sm:$0xff]
        %v521 = vld [vmem:[%s395 + $0x8] sm:$0xff]
        %v522 = vld [vmem:[%s395 + $0x10] sm:$0xff]
        %v523 = vld [vmem:[%s395 + $0x18] sm:$0xff]
        %v524 = vld [vmem:[%s395 + $0x20] sm:$0xff]
        %v525 = vld [vmem:[%s395 + $0x28] sm:$0xff]
        %v526 = vld [vmem:[%s395 + $0x30] sm:$0xff]
        %v527 = vld [vmem:[%s395 + $0x38] sm:$0xff]
        %v528 = vld [vmem:[%s395 + $0x40] sm:$0xff]
        %v529 = vld [vmem:[%s395 + $0x48] sm:$0xff]
        %v530 = vld [vmem:[%s395 + $0x50] sm:$0xff]
        %v531 = vld [vmem:[%s395 + $0x58] sm:$0xff]
        %v532 = vld [vmem:[%s395 + $0x60] sm:$0xff]
        %v533 = vld [vmem:[%s395 + $0x68] sm:$0xff]
        %v534 = vld [vmem:[%s395 + $0x70] sm:$0xff]
        %v535 = vld [vmem:[%s395 + $0x78] sm:$0xff]
        %536 = vmatprep.subr.mxu0 0.0
        %537 = vmatpush1.msra.mxu0 %v535
        %538 = vmatprep.subr.mxu0 0.0
        %539 = vmatpush1.msra.mxu0 %v534
        %540 = vmatprep.subr.mxu0 0.0
        %541 = vmatpush1.msra.mxu0 %v533
        %542 = vmatprep.subr.mxu0 0.0
        %543 = vmatpush1.msra.mxu0 %v532
        %544 = vmatprep.subr.mxu0 0.0
        %545 = vmatpush1.msra.mxu0 %v531
        %546 = vmatprep.subr.mxu0 0.0
        %547 = vmatpush1.msra.mxu0 %v530
        %548 = vmatprep.subr.mxu0 0.0
        %549 = vmatpush1.msra.mxu0 %v529
        %550 = vmatprep.subr.mxu0 0.0
        %551 = vmatpush1.msra.mxu0 %v528
        %552 = vmatprep.subr.mxu0 0.0
        %553 = vmatpush1.msra.mxu0 %v527
        %554 = vmatprep.subr.mxu0 0.0
        %555 = vmatpush1.msra.mxu0 %v526
        %556 = vmatprep.subr.mxu0 0.0
        %557 = vmatpush1.msra.mxu0 %v525
        %558 = vmatprep.subr.mxu0 0.0
        %559 = vmatpush1.msra.mxu0 %v524
        %560 = vmatprep.subr.mxu0 0.0
        %561 = vmatpush1.msra.mxu0 %v523
        %562 = vmatprep.subr.mxu0 0.0
        %563 = vmatpush1.msra.mxu0 %v522
        %564 = vmatprep.subr.mxu0 0.0
        %565 = vmatpush1.msra.mxu0 %v521
        %566 = vmatprep.subr.mxu0 0.0
        %567 = vmatpush1.msra.mxu0 %v520
        %568 = vmatprep.subr.mxu0 0.0
        %569 = vmatpush2.msra.mxu0 0.0
        %570 = vmatprep.subr.mxu0 0.0
        %571 = vmatpush2.msra.mxu0 0.0
        %572 = vmatprep.subr.mxu0 0.0
        %573 = vmatpush2.msra.mxu0 0.0
        %574 = vmatprep.subr.mxu0 0.0
        %575 = vmatpush2.msra.mxu0 0.0
        %576 = vmatprep.subr.mxu0 0.0
        %577 = vmatpush2.msra.mxu0 0.0
        %578 = vmatprep.subr.mxu0 0.0
        %579 = vmatpush2.msra.mxu0 0.0
        %580 = vmatprep.subr.mxu0 0.0
        %581 = vmatpush2.msra.mxu0 0.0
        %582 = vmatprep.subr.mxu0 0.0
        %583 = vmatpush2.msra.mxu0 0.0
        %584 = vmatprep.subr.mxu0 0.0
        %585 = vmatpush2.msra.mxu0 0.0
        %586 = vmatprep.subr.mxu0 0.0
        %587 = vmatpush2.msra.mxu0 0.0
        %588 = vmatprep.subr.mxu0 0.0
        %589 = vmatpush2.msra.mxu0 0.0
        %590 = vmatprep.subr.mxu0 0.0
        %591 = vmatpush2.msra.mxu0 0.0
        %592 = vmatprep.subr.mxu0 0.0
        %593 = vmatpush2.msra.mxu0 0.0
        %594 = vmatprep.subr.mxu0 0.0
        %595 = vmatpush2.msra.mxu0 0.0
        %596 = vmatprep.subr.mxu0 0.0
        %597 = vmatpush2.msra.mxu0 0.0
        %598 = vmatprep.subr.mxu0 0.0
        %599 = vmatpush2.msra.mxu0 0.0
        %600 = vmatprep.mubr.f32.mxu0 0.0
        %601 = vmatmul.mubr.f32.gmra.mxu0 %v480
        %v602 = vpop.f32.mrf.mxu0
        %v603 = vadd.f32 0.0, %v602
        %v604 = vpop.f32.mrf.mxu0
        %605 = vmatprep.mubr.f32.mxu0 0.0
        %606 = vmatmul.mubr.f32.gmra.mxu0 %v481
        %v607 = vpop.f32.mrf.mxu0
        %v608 = vadd.f32 0.0, %v607
        %v609 = vpop.f32.mrf.mxu0
        %610 = vmatprep.mubr.f32.mxu0 0.0
        %611 = vmatmul.mubr.f32.gmra.mxu0 %v482
        %v612 = vpop.f32.mrf.mxu0
        %v613 = vadd.f32 0.0, %v612
        %v614 = vpop.f32.mrf.mxu0
        %615 = vmatprep.mubr.f32.mxu0 0.0
        %616 = vmatmul.mubr.f32.gmra.mxu0 %v483
        %v617 = vpop.f32.mrf.mxu0
        %v618 = vadd.f32 0.0, %v617
        %v619 = vpop.f32.mrf.mxu0
        %620 = vmatprep.mubr.f32.mxu0 0.0
        %621 = vmatmul.mubr.f32.gmra.mxu0 %v484
        %v622 = vpop.f32.mrf.mxu0
        %v623 = vadd.f32 0.0, %v622
        %v624 = vpop.f32.mrf.mxu0
        %625 = vmatprep.mubr.f32.mxu0 0.0
        %626 = vmatmul.mubr.f32.gmra.mxu0 %v485
        %v627 = vpop.f32.mrf.mxu0
        %v628 = vadd.f32 0.0, %v627
        %v629 = vpop.f32.mrf.mxu0
        %630 = vmatprep.mubr.f32.mxu0 0.0
        %631 = vmatmul.mubr.f32.gmra.mxu0 %v486
        %v632 = vpop.f32.mrf.mxu0
        %v633 = vadd.f32 0.0, %v632
        %v634 = vpop.f32.mrf.mxu0
        %635 = vmatprep.mubr.f32.mxu0 0.0
        %636 = vmatmul.mubr.f32.gmra.mxu0 %v487
        %v637 = vpop.f32.mrf.mxu0
        %v638 = vadd.f32 0.0, %v637
        %v639 = vpop.f32.mrf.mxu0
        %640 = vdwg.mxu0
        %641 = vmatprep.subr.mxu0 0.0
        %642 = vmatpush1.msra.mxu0 %v503
        %643 = vmatprep.subr.mxu0 0.0
        %644 = vmatpush1.msra.mxu0 %v502
        %645 = vmatprep.subr.mxu0 0.0
        %646 = vmatpush1.msra.mxu0 %v501
        %647 = vmatprep.subr.mxu0 0.0
        %648 = vmatpush1.msra.mxu0 %v500
        %649 = vmatprep.subr.mxu0 0.0
        %650 = vmatpush1.msra.mxu0 %v499
        %651 = vmatprep.subr.mxu0 0.0
        %652 = vmatpush1.msra.mxu0 %v498
        %653 = vmatprep.subr.mxu0 0.0
        %654 = vmatpush1.msra.mxu0 %v497
        %655 = vmatprep.subr.mxu0 0.0
        %656 = vmatpush1.msra.mxu0 %v496
        %657 = vmatprep.subr.mxu0 0.0
        %658 = vmatpush1.msra.mxu0 %v495
        %659 = vmatprep.subr.mxu0 0.0
        %660 = vmatpush1.msra.mxu0 %v494
        %661 = vmatprep.subr.mxu0 0.0
        %662 = vmatpush1.msra.mxu0 %v493
        %663 = vmatprep.subr.mxu0 0.0
        %664 = vmatpush1.msra.mxu0 %v492
        %665 = vmatprep.subr.mxu0 0.0
        %666 = vmatpush1.msra.mxu0 %v491
        %667 = vmatprep.subr.mxu0 0.0
        %668 = vmatpush1.msra.mxu0 %v490
        %669 = vmatprep.subr.mxu0 0.0
        %670 = vmatpush1.msra.mxu0 %v489
        %671 = vmatprep.subr.mxu0 0.0
        %672 = vmatpush1.msra.mxu0 %v488
        %673 = vmatprep.subr.mxu0 0.0
        %674 = vmatpush2.msra.mxu0 %v519
        %675 = vmatprep.subr.mxu0 0.0
        %676 = vmatpush2.msra.mxu0 %v518
        %677 = vmatprep.subr.mxu0 0.0
        %678 = vmatpush2.msra.mxu0 %v517
        %679 = vmatprep.subr.mxu0 0.0
        %680 = vmatpush2.msra.mxu0 %v516
        %681 = vmatprep.subr.mxu0 0.0
        %682 = vmatpush2.msra.mxu0 %v515
        %683 = vmatprep.subr.mxu0 0.0
        %684 = vmatpush2.msra.mxu0 %v514
        %685 = vmatprep.subr.mxu0 0.0
        %686 = vmatpush2.msra.mxu0 %v513
        %687 = vmatprep.subr.mxu0 0.0
        %688 = vmatpush2.msra.mxu0 %v512
        %689 = vmatprep.subr.mxu0 0.0
        %690 = vmatpush2.msra.mxu0 %v511
        %691 = vmatprep.subr.mxu0 0.0
        %692 = vmatpush2.msra.mxu0 %v510
        %693 = vmatprep.subr.mxu0 0.0
        %694 = vmatpush2.msra.mxu0 %v509
        %695 = vmatprep.subr.mxu0 0.0
        %696 = vmatpush2.msra.mxu0 %v508
        %697 = vmatprep.subr.mxu0 0.0
        %698 = vmatpush2.msra.mxu0 %v507
        %699 = vmatprep.subr.mxu0 0.0
        %700 = vmatpush2.msra.mxu0 %v506
        %701 = vmatprep.subr.mxu0 0.0
        %702 = vmatpush2.msra.mxu0 %v505
        %703 = vmatprep.subr.mxu0 0.0
        %704 = vmatpush2.msra.mxu0 %v504
        %705 = vmatprep.mubr.f32.mxu0 %v455
        %706 = vmatmul.mubr.f32.gmra.mxu0 %v454
        %v707 = vpop.f32.mrf.mxu0
        %v708 = vadd.f32 %v603, %v707
        %v709 = vpop.f32.mrf.mxu0
        %710 = vmatprep.mubr.f32.mxu0 %v457
        %711 = vmatmul.mubr.f32.gmra.mxu0 %v456
        %v712 = vpop.f32.mrf.mxu0
        %v713 = vadd.f32 %v608, %v712
        %v714 = vpop.f32.mrf.mxu0
        %715 = vmatprep.mubr.f32.mxu0 %v459
        %716 = vmatmul.mubr.f32.gmra.mxu0 %v458
        %v717 = vpop.f32.mrf.mxu0
        %v718 = vadd.f32 %v613, %v717
        %v719 = vpop.f32.mrf.mxu0
        %720 = vmatprep.mubr.f32.mxu0 %v461
        %721 = vmatmul.mubr.f32.gmra.mxu0 %v460
        %v722 = vpop.f32.mrf.mxu0
        %v723 = vadd.f32 %v618, %v722
        %v724 = vpop.f32.mrf.mxu0
        %725 = vmatprep.mubr.f32.mxu0 %v463
        %726 = vmatmul.mubr.f32.gmra.mxu0 %v462
        %v727 = vpop.f32.mrf.mxu0
        %v728 = vadd.f32 %v623, %v727
        %v729 = vpop.f32.mrf.mxu0
        %730 = vmatprep.mubr.f32.mxu0 %v465
        %731 = vmatmul.mubr.f32.gmra.mxu0 %v464
        %v732 = vpop.f32.mrf.mxu0
        %v733 = vadd.f32 %v628, %v732
        %v734 = vpop.f32.mrf.mxu0
        %735 = vmatprep.mubr.f32.mxu0 %v467
        %736 = vmatmul.mubr.f32.gmra.mxu0 %v466
        %v737 = vpop.f32.mrf.mxu0
        %v738 = vadd.f32 %v633, %v737
        %v739 = vpop.f32.mrf.mxu0
        %740 = vmatprep.mubr.f32.mxu0 %v469
        %741 = vmatmul.mubr.f32.gmra.mxu0 %v468
        %v742 = vpop.f32.mrf.mxu0
        %v743 = vadd.f32 %v638, %v742
        %v744 = vpop.f32.mrf.mxu0
        %745 = vdwg.mxu0
        %vm746 = vcmp.gt.f32.partialorder %v708, 0.0
        %vm747 = vcmp.gt.f32.partialorder %v713, 0.0
        %vm748 = vcmp.gt.f32.partialorder %v718, 0.0
        %vm749 = vcmp.gt.f32.partialorder %v723, 0.0
        %vm750 = vcmp.gt.f32.partialorder %v728, 0.0
        %vm751 = vcmp.gt.f32.partialorder %v733, 0.0
        %vm752 = vcmp.gt.f32.partialorder %v738, 0.0
        %vm753 = vcmp.gt.f32.partialorder %v743, 0.0
        %v754 = vmul.f32 %v708, 0.2
        %v755 = vmul.f32 %v713, 0.2
        %v756 = vmul.f32 %v718, 0.2
        %v757 = vmul.f32 %v723, 0.2
        %v758 = vmul.f32 %v728, 0.2
        %v759 = vmul.f32 %v733, 0.2
        %v760 = vmul.f32 %v738, 0.2
        %v761 = vmul.f32 %v743, 0.2
        %v762 = vsel %vm746, %v708, %v754
        %v763 = vsel %vm747, %v713, %v755
        %v764 = vsel %vm748, %v718, %v756
        %v765 = vsel %vm749, %v723, %v757
        %v766 = vsel %vm750, %v728, %v758
        %v767 = vsel %vm751, %v733, %v759
        %v768 = vsel %vm752, %v738, %v760
        %v769 = vsel %vm753, %v743, %v761
        %v770 = vmax.f32 %v762, 0.0
        %v771 = vmax.f32 %v763, 0.0
        %v772 = vmax.f32 %v764, 0.0
        %v773 = vmax.f32 %v765, 0.0
        %v774 = vmax.f32 %v766, 0.0
        %v775 = vmax.f32 %v767, 0.0
        %v776 = vmax.f32 %v768, 0.0
        %v777 = vmax.f32 %v769, 0.0
        %v778 = vld [vmem:[#allocation2] sm:$0xf]
        %780 = vset.pattern.permute.xlu0 0
        %781 = vperm.xlu0 %780, %v770
        %v782 = vpop.permute.xlu0 %781
        %785 = vset.pattern.permute.xlu0 0
        %786 = vperm.xlu0 %785, %v771
        %v787 = vpop.permute.xlu0 %786
        %790 = vset.pattern.permute.xlu0 0
        %791 = vperm.xlu0 %790, %v772
        %v792 = vpop.permute.xlu0 %791
        %795 = vset.pattern.permute.xlu0 0
        %796 = vperm.xlu0 %795, %v773
        %v797 = vpop.permute.xlu0 %796
        %800 = vset.pattern.permute.xlu0 0
        %801 = vperm.xlu0 %800, %v774
        %v802 = vpop.permute.xlu0 %801
        %805 = vset.pattern.permute.xlu0 0
        %806 = vperm.xlu0 %805, %v775
        %v807 = vpop.permute.xlu0 %806
        %810 = vset.pattern.permute.xlu0 0
        %811 = vperm.xlu0 %810, %v776
        %v812 = vpop.permute.xlu0 %811
        %815 = vset.pattern.permute.xlu0 0
        %816 = vperm.xlu0 %815, %v777
        %v817 = vpop.permute.xlu0 %816
        %v819 = vmul.f32 %v782, %v480
        %v820 = vmul.f32 %v787, %v481
        %v821 = vmul.f32 %v792, %v482
        %v822 = vmul.f32 %v797, %v483
        %v823 = vmul.f32 %v802, %v484
        %v824 = vmul.f32 %v807, %v485
        %v825 = vmul.f32 %v812, %v486
        %v826 = vmul.f32 %v817, %v487
        %v827 = vmax.f32 %v819, %v823
        %v828 = vmax.f32 %v820, %v824
        %v829 = vmax.f32 %v821, %v825
        %v830 = vmax.f32 %v822, %v826
        %v831 = vmax.f32 %v827, %v828
        %v832 = vmax.f32 %v829, %v830
        %v833 = vmax.f32 %v831, %v832
        %v834 = vrot.slane %v833, 4
        %v835 = vmax.f32 %v833, %v834
        %v836 = vrot.slane %v835, 2
        %v837 = vmax.f32 %v835, %v836
        %v838 = vrot.slane %v837, 1
        %v839 = vmax.f32 %v837, %v838
        %v840 = vmax.f32 %v778, %v839
        %841 = vst [vmem:[#allocation2] sm:$0x1] %v840
        %842 = vset.pattern.permute.xlu0 1
        %843 = vperm.xlu0 %842, %v770
        %v844 = vpop.permute.xlu0 %843
        %846 = vset.pattern.permute.xlu0 1
        %847 = vperm.xlu0 %846, %v771
        %v848 = vpop.permute.xlu0 %847
        %850 = vset.pattern.permute.xlu0 1
        %851 = vperm.xlu0 %850, %v772
        %v852 = vpop.permute.xlu0 %851
        %854 = vset.pattern.permute.xlu0 1
        %855 = vperm.xlu0 %854, %v773
        %v856 = vpop.permute.xlu0 %855
        %858 = vset.pattern.permute.xlu0 1
        %859 = vperm.xlu0 %858, %v774
        %v860 = vpop.permute.xlu0 %859
        %862 = vset.pattern.permute.xlu0 1
        %863 = vperm.xlu0 %862, %v775
        %v864 = vpop.permute.xlu0 %863
        %866 = vset.pattern.permute.xlu0 1
        %867 = vperm.xlu0 %866, %v776
        %v868 = vpop.permute.xlu0 %867
        %870 = vset.pattern.permute.xlu0 1
        %871 = vperm.xlu0 %870, %v777
        %v872 = vpop.permute.xlu0 %871
        %v874 = vmul.f32 %v844, %v480
        %v875 = vmul.f32 %v848, %v481
        %v876 = vmul.f32 %v852, %v482
        %v877 = vmul.f32 %v856, %v483
        %v878 = vmul.f32 %v860, %v484
        %v879 = vmul.f32 %v864, %v485
        %v880 = vmul.f32 %v868, %v486
        %v881 = vmul.f32 %v872, %v487
        %v882 = vmax.f32 %v874, %v878
        %v883 = vmax.f32 %v875, %v879
        %v884 = vmax.f32 %v876, %v880
        %v885 = vmax.f32 %v877, %v881
        %v886 = vmax.f32 %v882, %v883
        %v887 = vmax.f32 %v884, %v885
        %v888 = vmax.f32 %v886, %v887
        %v889 = vrot.slane %v888, 4
        %v890 = vmax.f32 %v888, %v889
        %v891 = vrot.slane %v890, 2
        %v892 = vmax.f32 %v890, %v891
        %v893 = vrot.slane %v892, 1
        %v894 = vmax.f32 %v892, %v893
        %v895 = vmax.f32 %v778, %v894
        %896 = vst [vmem:[#allocation2] sm:$0x2] %v895
        %897 = vset.pattern.permute.xlu0 2
        %898 = vperm.xlu0 %897, %v770
        %v899 = vpop.permute.xlu0 %898
        %901 = vset.pattern.permute.xlu0 2
        %902 = vperm.xlu0 %901, %v771
        %v903 = vpop.permute.xlu0 %902
        %905 = vset.pattern.permute.xlu0 2
        %906 = vperm.xlu0 %905, %v772
        %v907 = vpop.permute.xlu0 %906
        %909 = vset.pattern.permute.xlu0 2
        %910 = vperm.xlu0 %909, %v773
        %v911 = vpop.permute.xlu0 %910
        %913 = vset.pattern.permute.xlu0 2
        %914 = vperm.xlu0 %913, %v774
        %v915 = vpop.permute.xlu0 %914
        %917 = vset.pattern.permute.xlu0 2
        %918 = vperm.xlu0 %917, %v775
        %v919 = vpop.permute.xlu0 %918
        %921 = vset.pattern.permute.xlu0 2
        %922 = vperm.xlu0 %921, %v776
        %v923 = vpop.permute.xlu0 %922
        %925 = vset.pattern.permute.xlu0 2
        %926 = vperm.xlu0 %925, %v777
        %v927 = vpop.permute.xlu0 %926
        %v929 = vmul.f32 %v899, %v480
        %v930 = vmul.f32 %v903, %v481
        %v931 = vmul.f32 %v907, %v482
        %v932 = vmul.f32 %v911, %v483
        %v933 = vmul.f32 %v915, %v484
        %v934 = vmul.f32 %v919, %v485
        %v935 = vmul.f32 %v923, %v486
        %v936 = vmul.f32 %v927, %v487
        %v937 = vmax.f32 %v929, %v933
        %v938 = vmax.f32 %v930, %v934
        %v939 = vmax.f32 %v931, %v935
        %v940 = vmax.f32 %v932, %v936
        %v941 = vmax.f32 %v937, %v938
        %v942 = vmax.f32 %v939, %v940
        %v943 = vmax.f32 %v941, %v942
        %v944 = vrot.slane %v943, 4
        %v945 = vmax.f32 %v943, %v944
        %v946 = vrot.slane %v945, 2
        %v947 = vmax.f32 %v945, %v946
        %v948 = vrot.slane %v947, 1
        %v949 = vmax.f32 %v947, %v948
        %v950 = vmax.f32 %v778, %v949
        %951 = vst [vmem:[#allocation2] sm:$0x4] %v950
        %952 = vset.pattern.permute.xlu0 3
        %953 = vperm.xlu0 %952, %v770
        %v954 = vpop.permute.xlu0 %953
        %956 = vset.pattern.permute.xlu0 3
        %957 = vperm.xlu0 %956, %v771
        %v958 = vpop.permute.xlu0 %957
        %960 = vset.pattern.permute.xlu0 3
        %961 = vperm.xlu0 %960, %v772
        %v962 = vpop.permute.xlu0 %961
        %964 = vset.pattern.permute.xlu0 3
        %965 = vperm.xlu0 %964, %v773
        %v966 = vpop.permute.xlu0 %965
        %968 = vset.pattern.permute.xlu0 3
        %969 = vperm.xlu0 %968, %v774
        %v970 = vpop.permute.xlu0 %969
        %972 = vset.pattern.permute.xlu0 3
        %973 = vperm.xlu0 %972, %v775
        %v974 = vpop.permute.xlu0 %973
        %976 = vset.pattern.permute.xlu0 3
        %977 = vperm.xlu0 %976, %v776
        %v978 = vpop.permute.xlu0 %977
        %980 = vset.pattern.permute.xlu0 3
        %981 = vperm.xlu0 %980, %v777
        %v982 = vpop.permute.xlu0 %981
        %v984 = vmul.f32 %v954, %v480
        %v985 = vmul.f32 %v958, %v481
        %v986 = vmul.f32 %v962, %v482
        %v987 = vmul.f32 %v966, %v483
        %v988 = vmul.f32 %v970, %v484
        %v989 = vmul.f32 %v974, %v485
        %v990 = vmul.f32 %v978, %v486
        %v991 = vmul.f32 %v982, %v487
        %v992 = vmax.f32 %v984, %v988
        %v993 = vmax.f32 %v985, %v989
        %v994 = vmax.f32 %v986, %v990
        %v995 = vmax.f32 %v987, %v991
        %v996 = vmax.f32 %v992, %v993
        %v997 = vmax.f32 %v994, %v995
        %v998 = vmax.f32 %v996, %v997
        %v999 = vrot.slane %v998, 4
        %v1000 = vmax.f32 %v998, %v999
        %v1001 = vrot.slane %v1000, 2
        %v1002 = vmax.f32 %v1000, %v1001
        %v1003 = vrot.slane %v1002, 1
        %v1004 = vmax.f32 %v1002, %v1003
        %v1005 = vmax.f32 %v778, %v1004
        %1006 = vst [vmem:[#allocation2] sm:$0x8] %v1005
        %v1007 = vld [vmem:[#allocation2] sm:$0xf]
        %v1008 = vsub.f32 %v778, %v1007
        %v1009 = vmul.f32 %v1008, 1.442695
        %v1010 = vpow.pop %v1009
        %1011 = vmatprep.subr.mxu0 0.0
        %1012 = vmatpush1.xpose.msra.mxu0 0.0
        %1013 = vmatprep.subr.mxu0 0.0
        %1014 = vmatpush1.xpose.msra.mxu0 0.0
        %1015 = vmatprep.subr.mxu0 0.0
        %1016 = vmatpush1.xpose.msra.mxu0 0.0
        %1017 = vmatprep.subr.mxu0 0.0
        %1018 = vmatpush1.xpose.msra.mxu0 0.0
        %1019 = vmatprep.subr.mxu0 0.0
        %1020 = vmatpush1.xpose.msra.mxu0 0.0
        %1021 = vmatprep.subr.mxu0 0.0
        %1022 = vmatpush1.xpose.msra.mxu0 0.0
        %1023 = vmatprep.subr.mxu0 0.0
        %1024 = vmatpush1.xpose.msra.mxu0 0.0
        %1025 = vmatprep.subr.mxu0 0.0
        %1026 = vmatpush1.xpose.msra.mxu0 0.0
        %1027 = vmatprep.subr.mxu0 0.0
        %1028 = vmatpush1.xpose.msra.mxu0 0.0
        %1029 = vmatprep.subr.mxu0 0.0
        %1030 = vmatpush1.xpose.msra.mxu0 0.0
        %1031 = vmatprep.subr.mxu0 0.0
        %1032 = vmatpush1.xpose.msra.mxu0 0.0
        %1033 = vmatprep.subr.mxu0 0.0
        %1034 = vmatpush1.xpose.msra.mxu0 0.0
        %1035 = vmatprep.subr.mxu0 0.0
        %1036 = vmatpush1.xpose.msra.mxu0 0.0
        %1037 = vmatprep.subr.mxu0 0.0
        %1038 = vmatpush1.xpose.msra.mxu0 0.0
        %1039 = vmatprep.subr.mxu0 0.0
        %1040 = vmatpush1.xpose.msra.mxu0 0.0
        %1041 = vmatprep.subr.mxu0 0.0
        %1042 = vmatpush1.xpose.msra.mxu0 %v1007
        %1043 = vmatprep.subr.mxu0 0.0
        %1044 = vmatpush2.xpose.msra.mxu0 0.0
        %1045 = vmatprep.subr.mxu0 0.0
        %1046 = vmatpush2.xpose.msra.mxu0 0.0
        %1047 = vmatprep.subr.mxu0 0.0
        %1048 = vmatpush2.xpose.msra.mxu0 0.0
        %1049 = vmatprep.subr.mxu0 0.0
        %1050 = vmatpush2.xpose.msra.mxu0 0.0
        %1051 = vmatprep.subr.mxu0 0.0
        %1052 = vmatpush2.xpose.msra.mxu0 0.0
        %1053 = vmatprep.subr.mxu0 0.0
        %1054 = vmatpush2.xpose.msra.mxu0 0.0
        %1055 = vmatprep.subr.mxu0 0.0
        %1056 = vmatpush2.xpose.msra.mxu0 0.0
        %1057 = vmatprep.subr.mxu0 0.0
        %1058 = vmatpush2.xpose.msra.mxu0 0.0
        %1059 = vmatprep.subr.mxu0 0.0
        %1060 = vmatpush2.xpose.msra.mxu0 0.0
        %1061 = vmatprep.subr.mxu0 0.0
        %1062 = vmatpush2.xpose.msra.mxu0 0.0
        %1063 = vmatprep.subr.mxu0 0.0
        %1064 = vmatpush2.xpose.msra.mxu0 0.0
        %1065 = vmatprep.subr.mxu0 0.0
        %1066 = vmatpush2.xpose.msra.mxu0 0.0
        %1067 = vmatprep.subr.mxu0 0.0
        %1068 = vmatpush2.xpose.msra.mxu0 0.0
        %1069 = vmatprep.subr.mxu0 0.0
        %1070 = vmatpush2.xpose.msra.mxu0 0.0
        %1071 = vmatprep.subr.mxu0 0.0
        %1072 = vmatpush2.xpose.msra.mxu0 0.0
        %1073 = vmatprep.subr.mxu0 0.0
        %1074 = vmatpush2.xpose.msra.mxu0 0.0
        %1075 = vmatprep.mubr.f32.mxu0 0.0
        %1076 = vmatmul.mubr.f32.gmra.mxu0 %v480
        %v1077 = vpop.f32.mrf.mxu0
        %v1078 = vadd.f32 0.0, %v1077
        %v1079 = vpop.f32.mrf.mxu0
        %1080 = vmatprep.mubr.f32.mxu0 0.0
        %1081 = vmatmul.mubr.f32.gmra.mxu0 %v481
        %v1082 = vpop.f32.mrf.mxu0
        %v1083 = vadd.f32 0.0, %v1082
        %v1084 = vpop.f32.mrf.mxu0
        %1085 = vmatprep.mubr.f32.mxu0 0.0
        %1086 = vmatmul.mubr.f32.gmra.mxu0 %v482
        %v1087 = vpop.f32.mrf.mxu0
        %v1088 = vadd.f32 0.0, %v1087
        %v1089 = vpop.f32.mrf.mxu0
        %1090 = vmatprep.mubr.f32.mxu0 0.0
        %1091 = vmatmul.mubr.f32.gmra.mxu0 %v483
        %v1092 = vpop.f32.mrf.mxu0
        %v1093 = vadd.f32 0.0, %v1092
        %v1094 = vpop.f32.mrf.mxu0
        %1095 = vmatprep.mubr.f32.mxu0 0.0
        %1096 = vmatmul.mubr.f32.gmra.mxu0 %v484
        %v1097 = vpop.f32.mrf.mxu0
        %v1098 = vadd.f32 0.0, %v1097
        %v1099 = vpop.f32.mrf.mxu0
        %1100 = vmatprep.mubr.f32.mxu0 0.0
        %1101 = vmatmul.mubr.f32.gmra.mxu0 %v485
        %v1102 = vpop.f32.mrf.mxu0
        %v1103 = vadd.f32 0.0, %v1102
        %v1104 = vpop.f32.mrf.mxu0
        %1105 = vmatprep.mubr.f32.mxu0 0.0
        %1106 = vmatmul.mubr.f32.gmra.mxu0 %v486
        %v1107 = vpop.f32.mrf.mxu0
        %v1108 = vadd.f32 0.0, %v1107
        %v1109 = vpop.f32.mrf.mxu0
        %1110 = vmatprep.mubr.f32.mxu0 0.0
        %1111 = vmatmul.mubr.f32.gmra.mxu0 %v487
        %v1112 = vpop.f32.mrf.mxu0
        %v1113 = vadd.f32 0.0, %v1112
        %v1114 = vpop.f32.mrf.mxu0
        %1115 = vdwg.mxu0
        %v1116 = vsub.f32 %v762, %v1078
        %v1117 = vsub.f32 %v763, %v1083
        %v1118 = vsub.f32 %v764, %v1088
        %v1119 = vsub.f32 %v765, %v1093
        %v1120 = vsub.f32 %v766, %v1098
        %v1121 = vsub.f32 %v767, %v1103
        %v1122 = vsub.f32 %v768, %v1108
        %v1123 = vsub.f32 %v769, %v1113
        %v1124 = vmul.f32 %v1116, 1.442695
        %v1125 = vpow.pop %v1124
        %v1126 = vmul.f32 %v1117, 1.442695
        %v1127 = vpow.pop %v1126
        %v1128 = vmul.f32 %v1118, 1.442695
        %v1129 = vpow.pop %v1128
        %v1130 = vmul.f32 %v1119, 1.442695
        %v1131 = vpow.pop %v1130
        %v1132 = vmul.f32 %v1120, 1.442695
        %v1133 = vpow.pop %v1132
        %v1134 = vmul.f32 %v1121, 1.442695
        %v1135 = vpow.pop %v1134
        %v1136 = vmul.f32 %v1122, 1.442695
        %v1137 = vpow.pop %v1136
        %v1138 = vmul.f32 %v1123, 1.442695
        %v1139 = vpow.pop %v1138
        %1140 = vxpose.xlu0.b32.start [1/16] %v1125, 128
        %1141 = vxpose.xlu0.b32.cont [2/16] %v1127, 128
        %1142 = vxpose.xlu0.b32.cont [3/16] %v1129, 128
        %1143 = vxpose.xlu0.b32.cont [4/16] %v1131, 128
        %1144 = vxpose.xlu0.b32.cont [5/16] %v1133, 128
        %1145 = vxpose.xlu0.b32.cont [6/16] %v1135, 128
        %1146 = vxpose.xlu0.b32.cont [7/16] %v1137, 128
        %1147 = vxpose.xlu0.b32.cont [8/16] %v1139, 128
        %1148 = vxpose.xlu0.b32.cont [9/16] 0.0, 128
        %1149 = vxpose.xlu0.b32.cont [10/16] 0.0, 128
        %1150 = vxpose.xlu0.b32.cont [11/16] 0.0, 128
        %1151 = vxpose.xlu0.b32.cont [12/16] 0.0, 128
        %1152 = vxpose.xlu0.b32.cont [13/16] 0.0, 128
        %1153 = vxpose.xlu0.b32.cont [14/16] 0.0, 128
        %1154 = vxpose.xlu0.b32.cont [15/16] 0.0, 128
        %1155 = vxpose.xlu0.b32.end [16/16] 0.0, 128
        %v1156 = vpop.trf.xlu0
        %v1157 = vpop.trf.xlu0
        %v1158 = vpop.trf.xlu0
        %v1159 = vpop.trf.xlu0
        %v1160 = vpop.trf.xlu0
        %v1161 = vpop.trf.xlu0
        %v1162 = vpop.trf.xlu0
        %v1163 = vpop.trf.xlu0
        %v1164 = vpop.trf.xlu0
        %v1165 = vpop.trf.xlu0
        %v1166 = vpop.trf.xlu0
        %v1167 = vpop.trf.xlu0
        %v1168 = vpop.trf.xlu0
        %v1169 = vpop.trf.xlu0
        %v1170 = vpop.trf.xlu0
        %v1171 = vpop.trf.xlu0
        %vm1172 = vcmask 523264
        %v1174 = vsel %vm1172, %v1156, 0
        %1176 = vmatprep.subr.mxu0 0.0
        %1177 = vmatpush1.msra.mxu0 0.0
        %1178 = vmatprep.subr.mxu0 0.0
        %1179 = vmatpush1.msra.mxu0 0.0
        %1180 = vmatprep.subr.mxu0 0.0
        %1181 = vmatpush1.msra.mxu0 0.0
        %1182 = vmatprep.subr.mxu0 0.0
        %1183 = vmatpush1.msra.mxu0 0.0
        %1184 = vmatprep.subr.mxu0 0.0
        %1185 = vmatpush1.msra.mxu0 0.0
        %1186 = vmatprep.subr.mxu0 0.0
        %1187 = vmatpush1.msra.mxu0 0.0
        %1188 = vmatprep.subr.mxu0 0.0
        %1189 = vmatpush1.msra.mxu0 0.0
        %1190 = vmatprep.subr.mxu0 0.0
        %1191 = vmatpush1.msra.mxu0 0.0
        %1192 = vmatprep.subr.mxu0 0.0
        %1193 = vmatpush1.msra.mxu0 %v487
        %1194 = vmatprep.subr.mxu0 0.0
        %1195 = vmatpush1.msra.mxu0 %v486
        %1196 = vmatprep.subr.mxu0 0.0
        %1197 = vmatpush1.msra.mxu0 %v485
        %1198 = vmatprep.subr.mxu0 0.0
        %1199 = vmatpush1.msra.mxu0 %v484
        %1200 = vmatprep.subr.mxu0 0.0
        %1201 = vmatpush1.msra.mxu0 %v483
        %1202 = vmatprep.subr.mxu0 0.0
        %1203 = vmatpush1.msra.mxu0 %v482
        %1204 = vmatprep.subr.mxu0 0.0
        %1205 = vmatpush1.msra.mxu0 %v481
        %1206 = vmatprep.subr.mxu0 0.0
        %1207 = vmatpush1.msra.mxu0 %v480
        %1208 = vmatprep.subr.mxu0 0.0
        %1209 = vmatpush2.msra.mxu0 0.0
        %1210 = vmatprep.subr.mxu0 0.0
        %1211 = vmatpush2.msra.mxu0 0.0
        %1212 = vmatprep.subr.mxu0 0.0
        %1213 = vmatpush2.msra.mxu0 0.0
        %1214 = vmatprep.subr.mxu0 0.0
        %1215 = vmatpush2.msra.mxu0 0.0
        %1216 = vmatprep.subr.mxu0 0.0
        %1217 = vmatpush2.msra.mxu0 0.0
        %1218 = vmatprep.subr.mxu0 0.0
        %1219 = vmatpush2.msra.mxu0 0.0
        %1220 = vmatprep.subr.mxu0 0.0
        %1221 = vmatpush2.msra.mxu0 0.0
        %1222 = vmatprep.subr.mxu0 0.0
        %1223 = vmatpush2.msra.mxu0 0.0
        %1224 = vmatprep.subr.mxu0 0.0
        %1225 = vmatpush2.msra.mxu0 0.0
        %1226 = vmatprep.subr.mxu0 0.0
        %1227 = vmatpush2.msra.mxu0 0.0
        %1228 = vmatprep.subr.mxu0 0.0
        %1229 = vmatpush2.msra.mxu0 0.0
        %1230 = vmatprep.subr.mxu0 0.0
        %1231 = vmatpush2.msra.mxu0 0.0
        %1232 = vmatprep.subr.mxu0 0.0
        %1233 = vmatpush2.msra.mxu0 0.0
        %1234 = vmatprep.subr.mxu0 0.0
        %1235 = vmatpush2.msra.mxu0 0.0
        %1236 = vmatprep.subr.mxu0 0.0
        %1237 = vmatpush2.msra.mxu0 0.0
        %1238 = vmatprep.subr.mxu0 0.0
        %1239 = vmatpush2.msra.mxu0 0.0
        %1240 = vmatprep.mubr.f32.mxu0 0.0
        %1241 = vmatmul.mubr.f32.gmra.mxu0 %v1174
        %v1242 = vpop.f32.mrf.mxu0
        %v1243 = vadd.f32 0.0, %v1242
        %v1244 = vpop.f32.mrf.mxu0
        %1245 = vdwg.mxu0
        %v1246 = vld [vmem:[#allocation3] sm:$0xf]
        %v1247 = vmul.f32 %v1010, %v1246
        %v1248 = vadd.f32 %v1247, %v1243
        %1249 = vst [vmem:[#allocation3] sm:$0xf] %v1248
        %v1250 = vld [vmem:[%s2] sm:$0xff]
        %v1251 = vld [vmem:[%s2 + $0x8] sm:$0xff]
        %v1252 = vld [vmem:[%s2 + $0x10] sm:$0xff]
        %v1253 = vld [vmem:[%s2 + $0x18] sm:$0xff]
        %v1254 = vld [vmem:[%s2 + $0x20] sm:$0xff]
        %v1255 = vld [vmem:[%s2 + $0x28] sm:$0xff]
        %v1256 = vld [vmem:[%s2 + $0x30] sm:$0xff]
        %v1257 = vld [vmem:[%s2 + $0x38] sm:$0xff]
        %v1258 = vld [vmem:[%s2 + $0x40] sm:$0xff]
        %v1259 = vld [vmem:[%s2 + $0x48] sm:$0xff]
        %v1260 = vld [vmem:[%s2 + $0x50] sm:$0xff]
        %v1261 = vld [vmem:[%s2 + $0x58] sm:$0xff]
        %v1262 = vld [vmem:[%s2 + $0x60] sm:$0xff]
        %v1263 = vld [vmem:[%s2 + $0x68] sm:$0xff]
        %v1264 = vld [vmem:[%s2 + $0x70] sm:$0xff]
        %v1265 = vld [vmem:[%s2 + $0x78] sm:$0xff]
        %v1266 = vld [vmem:[%s2 + $0x80] sm:$0xff]
        %v1267 = vld [vmem:[%s2 + $0x88] sm:$0xff]
        %v1268 = vld [vmem:[%s2 + $0x90] sm:$0xff]
        %v1269 = vld [vmem:[%s2 + $0x98] sm:$0xff]
        %v1270 = vld [vmem:[%s2 + $0xa0] sm:$0xff]
        %v1271 = vld [vmem:[%s2 + $0xa8] sm:$0xff]
        %v1272 = vld [vmem:[%s2 + $0xb0] sm:$0xff]
        %v1273 = vld [vmem:[%s2 + $0xb8] sm:$0xff]
        %v1274 = vld [vmem:[%s2 + $0xc0] sm:$0xff]
        %v1275 = vld [vmem:[%s2 + $0xc8] sm:$0xff]
        %v1276 = vld [vmem:[%s2 + $0xd0] sm:$0xff]
        %v1277 = vld [vmem:[%s2 + $0xd8] sm:$0xff]
        %v1278 = vld [vmem:[%s2 + $0xe0] sm:$0xff]
        %v1279 = vld [vmem:[%s2 + $0xe8] sm:$0xff]
        %v1280 = vld [vmem:[%s2 + $0xf0] sm:$0xff]
        %v1281 = vld [vmem:[%s2 + $0xf8] sm:$0xff]
        %1282 = vmatprep.subr.mxu0 0.0
        %1283 = vmatpush1.msra.mxu0 %v1265
        %1284 = vmatprep.subr.mxu0 0.0
        %1285 = vmatpush1.msra.mxu0 %v1264
        %1286 = vmatprep.subr.mxu0 0.0
        %1287 = vmatpush1.msra.mxu0 %v1263
        %1288 = vmatprep.subr.mxu0 0.0
        %1289 = vmatpush1.msra.mxu0 %v1262
        %1290 = vmatprep.subr.mxu0 0.0
        %1291 = vmatpush1.msra.mxu0 %v1261
        %1292 = vmatprep.subr.mxu0 0.0
        %1293 = vmatpush1.msra.mxu0 %v1260
        %1294 = vmatprep.subr.mxu0 0.0
        %1295 = vmatpush1.msra.mxu0 %v1259
        %1296 = vmatprep.subr.mxu0 0.0
        %1297 = vmatpush1.msra.mxu0 %v1258
        %1298 = vmatprep.subr.mxu0 0.0
        %1299 = vmatpush1.msra.mxu0 %v1257
        %1300 = vmatprep.subr.mxu0 0.0
        %1301 = vmatpush1.msra.mxu0 %v1256
        %1302 = vmatprep.subr.mxu0 0.0
        %1303 = vmatpush1.msra.mxu0 %v1255
        %1304 = vmatprep.subr.mxu0 0.0
        %1305 = vmatpush1.msra.mxu0 %v1254
        %1306 = vmatprep.subr.mxu0 0.0
        %1307 = vmatpush1.msra.mxu0 %v1253
        %1308 = vmatprep.subr.mxu0 0.0
        %1309 = vmatpush1.msra.mxu0 %v1252
        %1310 = vmatprep.subr.mxu0 0.0
        %1311 = vmatpush1.msra.mxu0 %v1251
        %1312 = vmatprep.subr.mxu0 0.0
        %1313 = vmatpush1.msra.mxu0 %v1250
        %1314 = vmatprep.subr.mxu0 0.0
        %1315 = vmatpush2.msra.mxu0 %v1281
        %1316 = vmatprep.subr.mxu0 0.0
        %1317 = vmatpush2.msra.mxu0 %v1280
        %1318 = vmatprep.subr.mxu0 0.0
        %1319 = vmatpush2.msra.mxu0 %v1279
        %1320 = vmatprep.subr.mxu0 0.0
        %1321 = vmatpush2.msra.mxu0 %v1278
        %1322 = vmatprep.subr.mxu0 0.0
        %1323 = vmatpush2.msra.mxu0 %v1277
        %1324 = vmatprep.subr.mxu0 0.0
        %1325 = vmatpush2.msra.mxu0 %v1276
        %1326 = vmatprep.subr.mxu0 0.0
        %1327 = vmatpush2.msra.mxu0 %v1275
        %1328 = vmatprep.subr.mxu0 0.0
        %1329 = vmatpush2.msra.mxu0 %v1274
        %1330 = vmatprep.subr.mxu0 0.0
        %1331 = vmatpush2.msra.mxu0 %v1273
        %1332 = vmatprep.subr.mxu0 0.0
        %1333 = vmatpush2.msra.mxu0 %v1272
        %1334 = vmatprep.subr.mxu0 0.0
        %1335 = vmatpush2.msra.mxu0 %v1271
        %1336 = vmatprep.subr.mxu0 0.0
        %1337 = vmatpush2.msra.mxu0 %v1270
        %1338 = vmatprep.subr.mxu0 0.0
        %1339 = vmatpush2.msra.mxu0 %v1269
        %1340 = vmatprep.subr.mxu0 0.0
        %1341 = vmatpush2.msra.mxu0 %v1268
        %1342 = vmatprep.subr.mxu0 0.0
        %1343 = vmatpush2.msra.mxu0 %v1267
        %1344 = vmatprep.subr.mxu0 0.0
        %1345 = vmatpush2.msra.mxu0 %v1266
        %1346 = vmatprep.mubr.f32.mxu0 %v455
        %1347 = vmatmul.mubr.f32.gmra.mxu0 %v454
        %v1348 = vpop.f32.mrf.mxu0
        %v1349 = vadd.f32 0.0, %v1348
        %v1350 = vpop.f32.mrf.mxu0
        %1351 = vmatprep.mubr.f32.mxu0 %v457
        %1352 = vmatmul.mubr.f32.gmra.mxu0 %v456
        %v1353 = vpop.f32.mrf.mxu0
        %v1354 = vadd.f32 0.0, %v1353
        %v1355 = vpop.f32.mrf.mxu0
        %1356 = vmatprep.mubr.f32.mxu0 %v459
        %1357 = vmatmul.mubr.f32.gmra.mxu0 %v458
        %v1358 = vpop.f32.mrf.mxu0
        %v1359 = vadd.f32 0.0, %v1358
        %v1360 = vpop.f32.mrf.mxu0
        %1361 = vmatprep.mubr.f32.mxu0 %v461
        %1362 = vmatmul.mubr.f32.gmra.mxu0 %v460
        %v1363 = vpop.f32.mrf.mxu0
        %v1364 = vadd.f32 0.0, %v1363
        %v1365 = vpop.f32.mrf.mxu0
        %1366 = vmatprep.mubr.f32.mxu0 %v463
        %1367 = vmatmul.mubr.f32.gmra.mxu0 %v462
        %v1368 = vpop.f32.mrf.mxu0
        %v1369 = vadd.f32 0.0, %v1368
        %v1370 = vpop.f32.mrf.mxu0
        %1371 = vmatprep.mubr.f32.mxu0 %v465
        %1372 = vmatmul.mubr.f32.gmra.mxu0 %v464
        %v1373 = vpop.f32.mrf.mxu0
        %v1374 = vadd.f32 0.0, %v1373
        %v1375 = vpop.f32.mrf.mxu0
        %1376 = vmatprep.mubr.f32.mxu0 %v467
        %1377 = vmatmul.mubr.f32.gmra.mxu0 %v466
        %v1378 = vpop.f32.mrf.mxu0
        %v1379 = vadd.f32 0.0, %v1378
        %v1380 = vpop.f32.mrf.mxu0
        %1381 = vmatprep.mubr.f32.mxu0 %v469
        %1382 = vmatmul.mubr.f32.gmra.mxu0 %v468
        %v1383 = vpop.f32.mrf.mxu0
        %v1384 = vadd.f32 0.0, %v1383
        %v1385 = vpop.f32.mrf.mxu0
        %1386 = vdwg.mxu0
        %v1387 = vld [vmem:[%s5] sm:$0xf]
        %vm1388 = vcmask 31744
        %v1390 = vsel %vm1388, %v1125, 0
        %v1393 = vsel %vm1388, %v1127, 0
        %v1396 = vsel %vm1388, %v1129, 0
        %v1399 = vsel %vm1388, %v1131, 0
        %v1402 = vsel %vm1388, %v1133, 0
        %v1405 = vsel %vm1388, %v1135, 0
        %v1408 = vsel %vm1388, %v1137, 0
        %v1411 = vsel %vm1388, %v1139, 0
        %vm1413 = vcmask 1043456
        %v1415 = vsel %vm1413, %v1387, 0
        %1417 = vmatprep.subr.mxu0 0.0
        %1418 = vmatpush1.msra.mxu0 0.0
        %1419 = vmatprep.subr.mxu0 0.0
        %1420 = vmatpush1.msra.mxu0 0.0
        %1421 = vmatprep.subr.mxu0 0.0
        %1422 = vmatpush1.msra.mxu0 0.0
        %1423 = vmatprep.subr.mxu0 0.0
        %1424 = vmatpush1.msra.mxu0 0.0
        %1425 = vmatprep.subr.mxu0 0.0
        %1426 = vmatpush1.msra.mxu0 0.0
        %1427 = vmatprep.subr.mxu0 0.0
        %1428 = vmatpush1.msra.mxu0 0.0
        %1429 = vmatprep.subr.mxu0 0.0
        %1430 = vmatpush1.msra.mxu0 0.0
        %1431 = vmatprep.subr.mxu0 0.0
        %1432 = vmatpush1.msra.mxu0 0.0
        %1433 = vmatprep.subr.mxu0 0.0
        %1434 = vmatpush1.msra.mxu0 0.0
        %1435 = vmatprep.subr.mxu0 0.0
        %1436 = vmatpush1.msra.mxu0 0.0
        %1437 = vmatprep.subr.mxu0 0.0
        %1438 = vmatpush1.msra.mxu0 0.0
        %1439 = vmatprep.subr.mxu0 0.0
        %1440 = vmatpush1.msra.mxu0 0.0
        %1441 = vmatprep.subr.mxu0 0.0
        %1442 = vmatpush1.msra.mxu0 0.0
        %1443 = vmatprep.subr.mxu0 0.0
        %1444 = vmatpush1.msra.mxu0 0.0
        %1445 = vmatprep.subr.mxu0 0.0
        %1446 = vmatpush1.msra.mxu0 0.0
        %1447 = vmatprep.subr.mxu0 0.0
        %1448 = vmatpush1.msra.mxu0 %v1415
        %1449 = vmatprep.subr.mxu0 0.0
        %1450 = vmatpush2.msra.mxu0 0.0
        %1451 = vmatprep.subr.mxu0 0.0
        %1452 = vmatpush2.msra.mxu0 0.0
        %1453 = vmatprep.subr.mxu0 0.0
        %1454 = vmatpush2.msra.mxu0 0.0
        %1455 = vmatprep.subr.mxu0 0.0
        %1456 = vmatpush2.msra.mxu0 0.0
        %1457 = vmatprep.subr.mxu0 0.0
        %1458 = vmatpush2.msra.mxu0 0.0
        %1459 = vmatprep.subr.mxu0 0.0
        %1460 = vmatpush2.msra.mxu0 0.0
        %1461 = vmatprep.subr.mxu0 0.0
        %1462 = vmatpush2.msra.mxu0 0.0
        %1463 = vmatprep.subr.mxu0 0.0
        %1464 = vmatpush2.msra.mxu0 0.0
        %1465 = vmatprep.subr.mxu0 0.0
        %1466 = vmatpush2.msra.mxu0 0.0
        %1467 = vmatprep.subr.mxu0 0.0
        %1468 = vmatpush2.msra.mxu0 0.0
        %1469 = vmatprep.subr.mxu0 0.0
        %1470 = vmatpush2.msra.mxu0 0.0
        %1471 = vmatprep.subr.mxu0 0.0
        %1472 = vmatpush2.msra.mxu0 0.0
        %1473 = vmatprep.subr.mxu0 0.0
        %1474 = vmatpush2.msra.mxu0 0.0
        %1475 = vmatprep.subr.mxu0 0.0
        %1476 = vmatpush2.msra.mxu0 0.0
        %1477 = vmatprep.subr.mxu0 0.0
        %1478 = vmatpush2.msra.mxu0 0.0
        %1479 = vmatprep.subr.mxu0 0.0
        %1480 = vmatpush2.msra.mxu0 0.0
        %1481 = vmatprep.mubr.f32.mxu0 0.0
        %1482 = vmatmul.mubr.f32.gmra.mxu0 %v1390
        %v1483 = vpop.f32.mrf.mxu0
        %v1484 = vadd.f32 0.0, %v1483
        %v1485 = vpop.f32.mrf.mxu0
        %1486 = vmatprep.mubr.f32.mxu0 0.0
        %1487 = vmatmul.mubr.f32.gmra.mxu0 %v1393
        %v1488 = vpop.f32.mrf.mxu0
        %v1489 = vadd.f32 0.0, %v1488
        %v1490 = vpop.f32.mrf.mxu0
        %1491 = vmatprep.mubr.f32.mxu0 0.0
        %1492 = vmatmul.mubr.f32.gmra.mxu0 %v1396
        %v1493 = vpop.f32.mrf.mxu0
        %v1494 = vadd.f32 0.0, %v1493
        %v1495 = vpop.f32.mrf.mxu0
        %1496 = vmatprep.mubr.f32.mxu0 0.0
        %1497 = vmatmul.mubr.f32.gmra.mxu0 %v1399
        %v1498 = vpop.f32.mrf.mxu0
        %v1499 = vadd.f32 0.0, %v1498
        %v1500 = vpop.f32.mrf.mxu0
        %1501 = vmatprep.mubr.f32.mxu0 0.0
        %1502 = vmatmul.mubr.f32.gmra.mxu0 %v1402
        %v1503 = vpop.f32.mrf.mxu0
        %v1504 = vadd.f32 0.0, %v1503
        %v1505 = vpop.f32.mrf.mxu0
        %1506 = vmatprep.mubr.f32.mxu0 0.0
        %1507 = vmatmul.mubr.f32.gmra.mxu0 %v1405
        %v1508 = vpop.f32.mrf.mxu0
        %v1509 = vadd.f32 0.0, %v1508
        %v1510 = vpop.f32.mrf.mxu0
        %1511 = vmatprep.mubr.f32.mxu0 0.0
        %1512 = vmatmul.mubr.f32.gmra.mxu0 %v1408
        %v1513 = vpop.f32.mrf.mxu0
        %v1514 = vadd.f32 0.0, %v1513
        %v1515 = vpop.f32.mrf.mxu0
        %1516 = vmatprep.mubr.f32.mxu0 0.0
        %1517 = vmatmul.mubr.f32.gmra.mxu0 %v1411
        %v1518 = vpop.f32.mrf.mxu0
        %v1519 = vadd.f32 0.0, %v1518
        %v1520 = vpop.f32.mrf.mxu0
        %1521 = vdwg.mxu0
        %v1522 = vmul.f32 %v1349, %v1484
        %v1523 = vmul.f32 %v1354, %v1489
        %v1524 = vmul.f32 %v1359, %v1494
        %v1525 = vmul.f32 %v1364, %v1499
        %v1526 = vmul.f32 %v1369, %v1504
        %v1527 = vmul.f32 %v1374, %v1509
        %v1528 = vmul.f32 %v1379, %v1514
        %v1529 = vmul.f32 %v1384, %v1519
        %1530 = vxpose.xlu0.b32.start [1/16] %v480, 128
        %1531 = vxpose.xlu0.b32.cont [2/16] %v481, 128
        %1532 = vxpose.xlu0.b32.cont [3/16] %v482, 128
        %1533 = vxpose.xlu0.b32.cont [4/16] %v483, 128
        %1534 = vxpose.xlu0.b32.cont [5/16] %v484, 128
        %1535 = vxpose.xlu0.b32.cont [6/16] %v485, 128
        %1536 = vxpose.xlu0.b32.cont [7/16] %v486, 128
        %1537 = vxpose.xlu0.b32.cont [8/16] %v487, 128
        %1538 = vxpose.xlu0.b32.cont [9/16] 0.0, 128
        %1539 = vxpose.xlu0.b32.cont [10/16] 0.0, 128
        %1540 = vxpose.xlu0.b32.cont [11/16] 0.0, 128
        %1541 = vxpose.xlu0.b32.cont [12/16] 0.0, 128
        %1542 = vxpose.xlu0.b32.cont [13/16] 0.0, 128
        %1543 = vxpose.xlu0.b32.cont [14/16] 0.0, 128
        %1544 = vxpose.xlu0.b32.cont [15/16] 0.0, 128
        %1545 = vxpose.xlu0.b32.end [16/16] 0.0, 128
        %v1546 = vpop.trf.xlu0
        %v1547 = vpop.trf.xlu0
        %v1548 = vpop.trf.xlu0
        %v1549 = vpop.trf.xlu0
        %v1550 = vpop.trf.xlu0
        %v1551 = vpop.trf.xlu0
        %v1552 = vpop.trf.xlu0
        %v1553 = vpop.trf.xlu0
        %v1554 = vpop.trf.xlu0
        %v1555 = vpop.trf.xlu0
        %v1556 = vpop.trf.xlu0
        %v1557 = vpop.trf.xlu0
        %v1558 = vpop.trf.xlu0
        %v1559 = vpop.trf.xlu0
        %v1560 = vpop.trf.xlu0
        %v1561 = vpop.trf.xlu0
        %v1563 = vsel %vm1172, %v1546, 0
        %v1566 = vsel %vm1172, %v1547, 0
        %v1569 = vsel %vm1172, %v1548, 0
        %v1572 = vsel %vm1172, %v1549, 0
        %v1575 = vsel %vm1172, %v1550, 0
        %v1578 = vsel %vm1172, %v1551, 0
        %v1581 = vsel %vm1172, %v1552, 0
        %v1584 = vsel %vm1172, %v1553, 0
        %v1587 = vsel %vm1172, %v1554, 0
        %v1590 = vsel %vm1172, %v1555, 0
        %v1593 = vsel %vm1172, %v1556, 0
        %v1596 = vsel %vm1172, %v1557, 0
        %v1599 = vsel %vm1172, %v1558, 0
        %v1602 = vsel %vm1172, %v1559, 0
        %v1605 = vsel %vm1172, %v1560, 0
        %v1608 = vsel %vm1172, %v1561, 0
        %1610 = vmatprep.subr.mxu0 0.0
        %1611 = vmatpush1.msra.mxu0 0.0
        %1612 = vmatprep.subr.mxu0 0.0
        %1613 = vmatpush1.msra.mxu0 0.0
        %1614 = vmatprep.subr.mxu0 0.0
        %1615 = vmatpush1.msra.mxu0 0.0
        %1616 = vmatprep.subr.mxu0 0.0
        %1617 = vmatpush1.msra.mxu0 0.0
        %1618 = vmatprep.subr.mxu0 0.0
        %1619 = vmatpush1.msra.mxu0 0.0
        %1620 = vmatprep.subr.mxu0 0.0
        %1621 = vmatpush1.msra.mxu0 0.0
        %1622 = vmatprep.subr.mxu0 0.0
        %1623 = vmatpush1.msra.mxu0 0.0
        %1624 = vmatprep.subr.mxu0 0.0
        %1625 = vmatpush1.msra.mxu0 0.0
        %1626 = vmatprep.subr.mxu0 0.0
        %1627 = vmatpush1.msra.mxu0 %v1529
        %1628 = vmatprep.subr.mxu0 0.0
        %1629 = vmatpush1.msra.mxu0 %v1528
        %1630 = vmatprep.subr.mxu0 0.0
        %1631 = vmatpush1.msra.mxu0 %v1527
        %1632 = vmatprep.subr.mxu0 0.0
        %1633 = vmatpush1.msra.mxu0 %v1526
        %1634 = vmatprep.subr.mxu0 0.0
        %1635 = vmatpush1.msra.mxu0 %v1525
        %1636 = vmatprep.subr.mxu0 0.0
        %1637 = vmatpush1.msra.mxu0 %v1524
        %1638 = vmatprep.subr.mxu0 0.0
        %1639 = vmatpush1.msra.mxu0 %v1523
        %1640 = vmatprep.subr.mxu0 0.0
        %1641 = vmatpush1.msra.mxu0 %v1522
        %1642 = vmatprep.subr.mxu0 0.0
        %1643 = vmatpush2.msra.mxu0 0.0
        %1644 = vmatprep.subr.mxu0 0.0
        %1645 = vmatpush2.msra.mxu0 0.0
        %1646 = vmatprep.subr.mxu0 0.0
        %1647 = vmatpush2.msra.mxu0 0.0
        %1648 = vmatprep.subr.mxu0 0.0
        %1649 = vmatpush2.msra.mxu0 0.0
        %1650 = vmatprep.subr.mxu0 0.0
        %1651 = vmatpush2.msra.mxu0 0.0
        %1652 = vmatprep.subr.mxu0 0.0
        %1653 = vmatpush2.msra.mxu0 0.0
        %1654 = vmatprep.subr.mxu0 0.0
        %1655 = vmatpush2.msra.mxu0 0.0
        %1656 = vmatprep.subr.mxu0 0.0
        %1657 = vmatpush2.msra.mxu0 0.0
        %1658 = vmatprep.subr.mxu0 0.0
        %1659 = vmatpush2.msra.mxu0 0.0
        %1660 = vmatprep.subr.mxu0 0.0
        %1661 = vmatpush2.msra.mxu0 0.0
        %1662 = vmatprep.subr.mxu0 0.0
        %1663 = vmatpush2.msra.mxu0 0.0
        %1664 = vmatprep.subr.mxu0 0.0
        %1665 = vmatpush2.msra.mxu0 0.0
        %1666 = vmatprep.subr.mxu0 0.0
        %1667 = vmatpush2.msra.mxu0 0.0
        %1668 = vmatprep.subr.mxu0 0.0
        %1669 = vmatpush2.msra.mxu0 0.0
        %1670 = vmatprep.subr.mxu0 0.0
        %1671 = vmatpush2.msra.mxu0 0.0
        %1672 = vmatprep.subr.mxu0 0.0
        %1673 = vmatpush2.msra.mxu0 0.0
        %1674 = vmatprep.mubr.f32.mxu0 0.0
        %1675 = vmatmul.mubr.f32.gmra.mxu0 %v1563
        %v1676 = vpop.f32.mrf.mxu0
        %v1677 = vadd.f32 0.0, %v1676
        %v1678 = vpop.f32.mrf.mxu0
        %1679 = vmatprep.mubr.f32.mxu0 0.0
        %1680 = vmatmul.mubr.f32.gmra.mxu0 %v1566
        %v1681 = vpop.f32.mrf.mxu0
        %v1682 = vadd.f32 0.0, %v1681
        %v1683 = vpop.f32.mrf.mxu0
        %1684 = vmatprep.mubr.f32.mxu0 0.0
        %1685 = vmatmul.mubr.f32.gmra.mxu0 %v1569
        %v1686 = vpop.f32.mrf.mxu0
        %v1687 = vadd.f32 0.0, %v1686
        %v1688 = vpop.f32.mrf.mxu0
        %1689 = vmatprep.mubr.f32.mxu0 0.0
        %1690 = vmatmul.mubr.f32.gmra.mxu0 %v1572
        %v1691 = vpop.f32.mrf.mxu0
        %v1692 = vadd.f32 0.0, %v1691
        %v1693 = vpop.f32.mrf.mxu0
        %1694 = vmatprep.mubr.f32.mxu0 0.0
        %1695 = vmatmul.mubr.f32.gmra.mxu0 %v1575
        %v1696 = vpop.f32.mrf.mxu0
        %v1697 = vadd.f32 0.0, %v1696
        %v1698 = vpop.f32.mrf.mxu0
        %1699 = vmatprep.mubr.f32.mxu0 0.0
        %1700 = vmatmul.mubr.f32.gmra.mxu0 %v1578
        %v1701 = vpop.f32.mrf.mxu0
        %v1702 = vadd.f32 0.0, %v1701
        %v1703 = vpop.f32.mrf.mxu0
        %1704 = vmatprep.mubr.f32.mxu0 0.0
        %1705 = vmatmul.mubr.f32.gmra.mxu0 %v1581
        %v1706 = vpop.f32.mrf.mxu0
        %v1707 = vadd.f32 0.0, %v1706
        %v1708 = vpop.f32.mrf.mxu0
        %1709 = vmatprep.mubr.f32.mxu0 0.0
        %1710 = vmatmul.mubr.f32.gmra.mxu0 %v1584
        %v1711 = vpop.f32.mrf.mxu0
        %v1712 = vadd.f32 0.0, %v1711
        %v1713 = vpop.f32.mrf.mxu0
        %1714 = vmatprep.mubr.f32.mxu0 0.0
        %1715 = vmatmul.mubr.f32.gmra.mxu0 %v1587
        %v1716 = vpop.f32.mrf.mxu0
        %v1717 = vadd.f32 0.0, %v1716
        %v1718 = vpop.f32.mrf.mxu0
        %1719 = vmatprep.mubr.f32.mxu0 0.0
        %1720 = vmatmul.mubr.f32.gmra.mxu0 %v1590
        %v1721 = vpop.f32.mrf.mxu0
        %v1722 = vadd.f32 0.0, %v1721
        %v1723 = vpop.f32.mrf.mxu0
        %1724 = vmatprep.mubr.f32.mxu0 0.0
        %1725 = vmatmul.mubr.f32.gmra.mxu0 %v1593
        %v1726 = vpop.f32.mrf.mxu0
        %v1727 = vadd.f32 0.0, %v1726
        %v1728 = vpop.f32.mrf.mxu0
        %1729 = vmatprep.mubr.f32.mxu0 0.0
        %1730 = vmatmul.mubr.f32.gmra.mxu0 %v1596
        %v1731 = vpop.f32.mrf.mxu0
        %v1732 = vadd.f32 0.0, %v1731
        %v1733 = vpop.f32.mrf.mxu0
        %1734 = vmatprep.mubr.f32.mxu0 0.0
        %1735 = vmatmul.mubr.f32.gmra.mxu0 %v1599
        %v1736 = vpop.f32.mrf.mxu0
        %v1737 = vadd.f32 0.0, %v1736
        %v1738 = vpop.f32.mrf.mxu0
        %1739 = vmatprep.mubr.f32.mxu0 0.0
        %1740 = vmatmul.mubr.f32.gmra.mxu0 %v1602
        %v1741 = vpop.f32.mrf.mxu0
        %v1742 = vadd.f32 0.0, %v1741
        %v1743 = vpop.f32.mrf.mxu0
        %1744 = vmatprep.mubr.f32.mxu0 0.0
        %1745 = vmatmul.mubr.f32.gmra.mxu0 %v1605
        %v1746 = vpop.f32.mrf.mxu0
        %v1747 = vadd.f32 0.0, %v1746
        %v1748 = vpop.f32.mrf.mxu0
        %1749 = vmatprep.mubr.f32.mxu0 0.0
        %1750 = vmatmul.mubr.f32.gmra.mxu0 %v1608
        %v1751 = vpop.f32.mrf.mxu0
        %v1752 = vadd.f32 0.0, %v1751
        %v1753 = vpop.f32.mrf.mxu0
        %1754 = vdwg.mxu0
        %1755 = vxpose.xlu0.b32.start [1/16] %v1010, 128
        %1756 = vxpose.xlu0.b32.cont [2/16] 0.0, 128
        %1757 = vxpose.xlu0.b32.cont [3/16] 0.0, 128
        %1758 = vxpose.xlu0.b32.cont [4/16] 0.0, 128
        %1759 = vxpose.xlu0.b32.cont [5/16] 0.0, 128
        %1760 = vxpose.xlu0.b32.cont [6/16] 0.0, 128
        %1761 = vxpose.xlu0.b32.cont [7/16] 0.0, 128
        %1762 = vxpose.xlu0.b32.cont [8/16] 0.0, 128
        %1763 = vxpose.xlu0.b32.cont [9/16] 0.0, 128
        %1764 = vxpose.xlu0.b32.cont [10/16] 0.0, 128
        %1765 = vxpose.xlu0.b32.cont [11/16] 0.0, 128
        %1766 = vxpose.xlu0.b32.cont [12/16] 0.0, 128
        %1767 = vxpose.xlu0.b32.cont [13/16] 0.0, 128
        %1768 = vxpose.xlu0.b32.cont [14/16] 0.0, 128
        %1769 = vxpose.xlu0.b32.cont [15/16] 0.0, 128
        %1770 = vxpose.xlu0.b32.end [16/16] 0.0, 128
        %v1771 = vpop.trf.xlu0
        %v1772 = vpop.trf.xlu0
        %v1773 = vpop.trf.xlu0
        %v1774 = vpop.trf.xlu0
        %v1775 = vpop.trf.xlu0
        %v1776 = vpop.trf.xlu0
        %v1777 = vpop.trf.xlu0
        %v1778 = vpop.trf.xlu0
        %v1779 = vpop.trf.xlu0
        %v1780 = vpop.trf.xlu0
        %v1781 = vpop.trf.xlu0
        %v1782 = vpop.trf.xlu0
        %v1783 = vpop.trf.xlu0
        %v1784 = vpop.trf.xlu0
        %v1785 = vpop.trf.xlu0
        %v1786 = vpop.trf.xlu0
        %v1788 = vsel %vm1388, %v1771, 0
        %v1791 = vsel %vm1388, %v1772, 0
        %v1794 = vsel %vm1388, %v1773, 0
        %v1797 = vsel %vm1388, %v1774, 0
        %v1800 = vsel %vm1388, %v1775, 0
        %v1803 = vsel %vm1388, %v1776, 0
        %v1806 = vsel %vm1388, %v1777, 0
        %v1809 = vsel %vm1388, %v1778, 0
        %v1812 = vsel %vm1388, %v1779, 0
        %v1815 = vsel %vm1388, %v1780, 0
        %v1818 = vsel %vm1388, %v1781, 0
        %v1821 = vsel %vm1388, %v1782, 0
        %v1824 = vsel %vm1388, %v1783, 0
        %v1827 = vsel %vm1388, %v1784, 0
        %v1830 = vsel %vm1388, %v1785, 0
        %v1833 = vsel %vm1388, %v1786, 0
        %1835 = vmatprep.subr.mxu0 0.0
        %1836 = vmatpush1.msra.mxu0 0.0
        %1837 = vmatprep.subr.mxu0 0.0
        %1838 = vmatpush1.msra.mxu0 0.0
        %1839 = vmatprep.subr.mxu0 0.0
        %1840 = vmatpush1.msra.mxu0 0.0
        %1841 = vmatprep.subr.mxu0 0.0
        %1842 = vmatpush1.msra.mxu0 0.0
        %1843 = vmatprep.subr.mxu0 0.0
        %1844 = vmatpush1.msra.mxu0 0.0
        %1845 = vmatprep.subr.mxu0 0.0
        %1846 = vmatpush1.msra.mxu0 0.0
        %1847 = vmatprep.subr.mxu0 0.0
        %1848 = vmatpush1.msra.mxu0 0.0
        %1849 = vmatprep.subr.mxu0 0.0
        %1850 = vmatpush1.msra.mxu0 0.0
        %1851 = vmatprep.subr.mxu0 0.0
        %1852 = vmatpush1.msra.mxu0 0.0
        %1853 = vmatprep.subr.mxu0 0.0
        %1854 = vmatpush1.msra.mxu0 0.0
        %1855 = vmatprep.subr.mxu0 0.0
        %1856 = vmatpush1.msra.mxu0 0.0
        %1857 = vmatprep.subr.mxu0 0.0
        %1858 = vmatpush1.msra.mxu0 0.0
        %1859 = vmatprep.subr.mxu0 0.0
        %1860 = vmatpush1.msra.mxu0 0.0
        %1861 = vmatprep.subr.mxu0 0.0
        %1862 = vmatpush1.msra.mxu0 0.0
        %1863 = vmatprep.subr.mxu0 0.0
        %1864 = vmatpush1.msra.mxu0 0.0
        %1865 = vmatprep.subr.mxu0 0.0
        %1866 = vmatpush1.msra.mxu0 %v1415
        %1867 = vmatprep.subr.mxu0 0.0
        %1868 = vmatpush2.msra.mxu0 0.0
        %1869 = vmatprep.subr.mxu0 0.0
        %1870 = vmatpush2.msra.mxu0 0.0
        %1871 = vmatprep.subr.mxu0 0.0
        %1872 = vmatpush2.msra.mxu0 0.0
        %1873 = vmatprep.subr.mxu0 0.0
        %1874 = vmatpush2.msra.mxu0 0.0
        %1875 = vmatprep.subr.mxu0 0.0
        %1876 = vmatpush2.msra.mxu0 0.0
        %1877 = vmatprep.subr.mxu0 0.0
        %1878 = vmatpush2.msra.mxu0 0.0
        %1879 = vmatprep.subr.mxu0 0.0
        %1880 = vmatpush2.msra.mxu0 0.0
        %1881 = vmatprep.subr.mxu0 0.0
        %1882 = vmatpush2.msra.mxu0 0.0
        %1883 = vmatprep.subr.mxu0 0.0
        %1884 = vmatpush2.msra.mxu0 0.0
        %1885 = vmatprep.subr.mxu0 0.0
        %1886 = vmatpush2.msra.mxu0 0.0
        %1887 = vmatprep.subr.mxu0 0.0
        %1888 = vmatpush2.msra.mxu0 0.0
        %1889 = vmatprep.subr.mxu0 0.0
        %1890 = vmatpush2.msra.mxu0 0.0
        %1891 = vmatprep.subr.mxu0 0.0
        %1892 = vmatpush2.msra.mxu0 0.0
        %1893 = vmatprep.subr.mxu0 0.0
        %1894 = vmatpush2.msra.mxu0 0.0
        %1895 = vmatprep.subr.mxu0 0.0
        %1896 = vmatpush2.msra.mxu0 0.0
        %1897 = vmatprep.subr.mxu0 0.0
        %1898 = vmatpush2.msra.mxu0 0.0
        %1899 = vmatprep.mubr.f32.mxu0 0.0
        %1900 = vmatmul.mubr.f32.gmra.mxu0 %v1788
        %v1901 = vpop.f32.mrf.mxu0
        %v1902 = vadd.f32 0.0, %v1901
        %v1903 = vpop.f32.mrf.mxu0
        %1904 = vmatprep.mubr.f32.mxu0 0.0
        %1905 = vmatmul.mubr.f32.gmra.mxu0 %v1791
        %v1906 = vpop.f32.mrf.mxu0
        %v1907 = vadd.f32 0.0, %v1906
        %v1908 = vpop.f32.mrf.mxu0
        %1909 = vmatprep.mubr.f32.mxu0 0.0
        %1910 = vmatmul.mubr.f32.gmra.mxu0 %v1794
        %v1911 = vpop.f32.mrf.mxu0
        %v1912 = vadd.f32 0.0, %v1911
        %v1913 = vpop.f32.mrf.mxu0
        %1914 = vmatprep.mubr.f32.mxu0 0.0
        %1915 = vmatmul.mubr.f32.gmra.mxu0 %v1797
        %v1916 = vpop.f32.mrf.mxu0
        %v1917 = vadd.f32 0.0, %v1916
        %v1918 = vpop.f32.mrf.mxu0
        %1919 = vmatprep.mubr.f32.mxu0 0.0
        %1920 = vmatmul.mubr.f32.gmra.mxu0 %v1800
        %v1921 = vpop.f32.mrf.mxu0
        %v1922 = vadd.f32 0.0, %v1921
        %v1923 = vpop.f32.mrf.mxu0
        %1924 = vmatprep.mubr.f32.mxu0 0.0
        %1925 = vmatmul.mubr.f32.gmra.mxu0 %v1803
        %v1926 = vpop.f32.mrf.mxu0
        %v1927 = vadd.f32 0.0, %v1926
        %v1928 = vpop.f32.mrf.mxu0
        %1929 = vmatprep.mubr.f32.mxu0 0.0
        %1930 = vmatmul.mubr.f32.gmra.mxu0 %v1806
        %v1931 = vpop.f32.mrf.mxu0
        %v1932 = vadd.f32 0.0, %v1931
        %v1933 = vpop.f32.mrf.mxu0
        %1934 = vmatprep.mubr.f32.mxu0 0.0
        %1935 = vmatmul.mubr.f32.gmra.mxu0 %v1809
        %v1936 = vpop.f32.mrf.mxu0
        %v1937 = vadd.f32 0.0, %v1936
        %v1938 = vpop.f32.mrf.mxu0
        %1939 = vmatprep.mubr.f32.mxu0 0.0
        %1940 = vmatmul.mubr.f32.gmra.mxu0 %v1812
        %v1941 = vpop.f32.mrf.mxu0
        %v1942 = vadd.f32 0.0, %v1941
        %v1943 = vpop.f32.mrf.mxu0
        %1944 = vmatprep.mubr.f32.mxu0 0.0
        %1945 = vmatmul.mubr.f32.gmra.mxu0 %v1815
        %v1946 = vpop.f32.mrf.mxu0
        %v1947 = vadd.f32 0.0, %v1946
        %v1948 = vpop.f32.mrf.mxu0
        %1949 = vmatprep.mubr.f32.mxu0 0.0
        %1950 = vmatmul.mubr.f32.gmra.mxu0 %v1818
        %v1951 = vpop.f32.mrf.mxu0
        %v1952 = vadd.f32 0.0, %v1951
        %v1953 = vpop.f32.mrf.mxu0
        %1954 = vmatprep.mubr.f32.mxu0 0.0
        %1955 = vmatmul.mubr.f32.gmra.mxu0 %v1821
        %v1956 = vpop.f32.mrf.mxu0
        %v1957 = vadd.f32 0.0, %v1956
        %v1958 = vpop.f32.mrf.mxu0
        %1959 = vmatprep.mubr.f32.mxu0 0.0
        %1960 = vmatmul.mubr.f32.gmra.mxu0 %v1824
        %v1961 = vpop.f32.mrf.mxu0
        %v1962 = vadd.f32 0.0, %v1961
        %v1963 = vpop.f32.mrf.mxu0
        %1964 = vmatprep.mubr.f32.mxu0 0.0
        %1965 = vmatmul.mubr.f32.gmra.mxu0 %v1827
        %v1966 = vpop.f32.mrf.mxu0
        %v1967 = vadd.f32 0.0, %v1966
        %v1968 = vpop.f32.mrf.mxu0
        %1969 = vmatprep.mubr.f32.mxu0 0.0
        %1970 = vmatmul.mubr.f32.gmra.mxu0 %v1830
        %v1971 = vpop.f32.mrf.mxu0
        %v1972 = vadd.f32 0.0, %v1971
        %v1973 = vpop.f32.mrf.mxu0
        %1974 = vmatprep.mubr.f32.mxu0 0.0
        %1975 = vmatmul.mubr.f32.gmra.mxu0 %v1833
        %v1976 = vpop.f32.mrf.mxu0
        %v1977 = vadd.f32 0.0, %v1976
        %v1978 = vpop.f32.mrf.mxu0
        %1979 = vdwg.mxu0
        %v1980 = vld [vmem:[#allocation4] sm:$0xff]
        %v1981 = vld [vmem:[#allocation4 + $0x8] sm:$0xff]
        %v1982 = vld [vmem:[#allocation4 + $0x10] sm:$0xff]
        %v1983 = vld [vmem:[#allocation4 + $0x18] sm:$0xff]
        %v1984 = vld [vmem:[#allocation4 + $0x20] sm:$0xff]
        %v1985 = vld [vmem:[#allocation4 + $0x28] sm:$0xff]
        %v1986 = vld [vmem:[#allocation4 + $0x30] sm:$0xff]
        %v1987 = vld [vmem:[#allocation4 + $0x38] sm:$0xff]
        %v1988 = vld [vmem:[#allocation4 + $0x40] sm:$0xff]
        %v1989 = vld [vmem:[#allocation4 + $0x48] sm:$0xff]
        %v1990 = vld [vmem:[#allocation4 + $0x50] sm:$0xff]
        %v1991 = vld [vmem:[#allocation4 + $0x58] sm:$0xff]
        %v1992 = vld [vmem:[#allocation4 + $0x60] sm:$0xff]
        %v1993 = vld [vmem:[#allocation4 + $0x68] sm:$0xff]
        %v1994 = vld [vmem:[#allocation4 + $0x70] sm:$0xff]
        %v1995 = vld [vmem:[#allocation4 + $0x78] sm:$0xff]
        %v1996 = vmul.f32 %v1902, %v1980
        %v1997 = vmul.f32 %v1907, %v1981
        %v1998 = vmul.f32 %v1912, %v1982
        %v1999 = vmul.f32 %v1917, %v1983
        %v2000 = vmul.f32 %v1922, %v1984
        %v2001 = vmul.f32 %v1927, %v1985
        %v2002 = vmul.f32 %v1932, %v1986
        %v2003 = vmul.f32 %v1937, %v1987
        %v2004 = vmul.f32 %v1942, %v1988
        %v2005 = vmul.f32 %v1947, %v1989
        %v2006 = vmul.f32 %v1952, %v1990
        %v2007 = vmul.f32 %v1957, %v1991
        %v2008 = vmul.f32 %v1962, %v1992
        %v2009 = vmul.f32 %v1967, %v1993
        %v2010 = vmul.f32 %v1972, %v1994
        %v2011 = vmul.f32 %v1977, %v1995
        %v2012 = vadd.f32 %v1996, %v1677
        %v2013 = vadd.f32 %v1997, %v1682
        %v2014 = vadd.f32 %v1998, %v1687
        %v2015 = vadd.f32 %v1999, %v1692
        %v2016 = vadd.f32 %v2000, %v1697
        %v2017 = vadd.f32 %v2001, %v1702
        %v2018 = vadd.f32 %v2002, %v1707
        %v2019 = vadd.f32 %v2003, %v1712
        %v2020 = vadd.f32 %v2004, %v1717
        %v2021 = vadd.f32 %v2005, %v1722
        %v2022 = vadd.f32 %v2006, %v1727
        %v2023 = vadd.f32 %v2007, %v1732
        %v2024 = vadd.f32 %v2008, %v1737
        %v2025 = vadd.f32 %v2009, %v1742
        %v2026 = vadd.f32 %v2010, %v1747
        %v2027 = vadd.f32 %v2011, %v1752
        %vm2028 = vcmask 261120
        %2029 = vst.msk [vmem:[#allocation4] sm:$0xff] %vm2028, %v2012
        %2030 = vst.msk [vmem:[#allocation4 + $0x8] sm:$0xff] %vm2028, %v2013
        %2031 = vst.msk [vmem:[#allocation4 + $0x10] sm:$0xff] %vm2028, %v2014
        %2032 = vst.msk [vmem:[#allocation4 + $0x18] sm:$0xff] %vm2028, %v2015
        %2033 = vst.msk [vmem:[#allocation4 + $0x20] sm:$0xff] %vm2028, %v2016
        %2034 = vst.msk [vmem:[#allocation4 + $0x28] sm:$0xff] %vm2028, %v2017
        %2035 = vst.msk [vmem:[#allocation4 + $0x30] sm:$0xff] %vm2028, %v2018
        %2036 = vst.msk [vmem:[#allocation4 + $0x38] sm:$0xff] %vm2028, %v2019
        %2037 = vst.msk [vmem:[#allocation4 + $0x40] sm:$0xff] %vm2028, %v2020
        %2038 = vst.msk [vmem:[#allocation4 + $0x48] sm:$0xff] %vm2028, %v2021
        %2039 = vst.msk [vmem:[#allocation4 + $0x50] sm:$0xff] %vm2028, %v2022
        %2040 = vst.msk [vmem:[#allocation4 + $0x58] sm:$0xff] %vm2028, %v2023
        %2041 = vst.msk [vmem:[#allocation4 + $0x60] sm:$0xff] %vm2028, %v2024
        %2042 = vst.msk [vmem:[#allocation4 + $0x68] sm:$0xff] %vm2028, %v2025
        %2043 = vst.msk [vmem:[#allocation4 + $0x70] sm:$0xff] %vm2028, %v2026
        %2044 = vst.msk [vmem:[#allocation4 + $0x78] sm:$0xff] %vm2028, %v2027
        %p2045 = scmp.eq.s32.totalorder %s24, 3
        // Predicated region
        $region95: #{tpu_custom_call.1} parent=85 // pred_check
          %p2046 = pneg %p2045
        $region96: #{tpu_custom_call.1} parent=85 // pred_check_branch
          %2048 = sbr.rel (%p2046) target = $region98
        $region97: #{tpu_custom_call.1} parent=85 // pred_region
          %v2049 = vld [vmem:[#allocation3] sm:$0xf]
          %v2050 = vadd.f32 %v2049, 1e-10
          %v2051 = vrcp.pop %v2050
          %v2052 = vld [vmem:[%s5] sm:$0xf]
          %2053 = vxpose.xlu0.b32.start [1/16] %v2051, 128
          %2054 = vxpose.xlu0.b32.cont [2/16] 0.0, 128
          %2055 = vxpose.xlu0.b32.cont [3/16] 0.0, 128
          %2056 = vxpose.xlu0.b32.cont [4/16] 0.0, 128
          %2057 = vxpose.xlu0.b32.cont [5/16] 0.0, 128
          %2058 = vxpose.xlu0.b32.cont [6/16] 0.0, 128
          %2059 = vxpose.xlu0.b32.cont [7/16] 0.0, 128
          %2060 = vxpose.xlu0.b32.cont [8/16] 0.0, 128
          %2061 = vxpose.xlu0.b32.cont [9/16] 0.0, 128
          %2062 = vxpose.xlu0.b32.cont [10/16] 0.0, 128
          %2063 = vxpose.xlu0.b32.cont [11/16] 0.0, 128
          %2064 = vxpose.xlu0.b32.cont [12/16] 0.0, 128
          %2065 = vxpose.xlu0.b32.cont [13/16] 0.0, 128
          %2066 = vxpose.xlu0.b32.cont [14/16] 0.0, 128
          %2067 = vxpose.xlu0.b32.cont [15/16] 0.0, 128
          %2068 = vxpose.xlu0.b32.end [16/16] 0.0, 128
          %v2069 = vpop.trf.xlu0
          %v2070 = vpop.trf.xlu0
          %v2071 = vpop.trf.xlu0
          %v2072 = vpop.trf.xlu0
          %v2073 = vpop.trf.xlu0
          %v2074 = vpop.trf.xlu0
          %v2075 = vpop.trf.xlu0
          %v2076 = vpop.trf.xlu0
          %v2077 = vpop.trf.xlu0
          %v2078 = vpop.trf.xlu0
          %v2079 = vpop.trf.xlu0
          %v2080 = vpop.trf.xlu0
          %v2081 = vpop.trf.xlu0
          %v2082 = vpop.trf.xlu0
          %v2083 = vpop.trf.xlu0
          %v2084 = vpop.trf.xlu0
          %v2086 = vsel %vm1388, %v2069, 0
          %v2089 = vsel %vm1388, %v2070, 0
          %v2092 = vsel %vm1388, %v2071, 0
          %v2095 = vsel %vm1388, %v2072, 0
          %v2098 = vsel %vm1388, %v2073, 0
          %v2101 = vsel %vm1388, %v2074, 0
          %v2104 = vsel %vm1388, %v2075, 0
          %v2107 = vsel %vm1388, %v2076, 0
          %v2110 = vsel %vm1388, %v2077, 0
          %v2113 = vsel %vm1388, %v2078, 0
          %v2116 = vsel %vm1388, %v2079, 0
          %v2119 = vsel %vm1388, %v2080, 0
          %v2122 = vsel %vm1388, %v2081, 0
          %v2125 = vsel %vm1388, %v2082, 0
          %v2128 = vsel %vm1388, %v2083, 0
          %v2131 = vsel %vm1388, %v2084, 0
          %v2134 = vsel %vm1413, %v2052, 0
          %2136 = vmatprep.subr.mxu0 0.0
          %2137 = vmatpush1.msra.mxu0 0.0
          %2138 = vmatprep.subr.mxu0 0.0
          %2139 = vmatpush1.msra.mxu0 0.0
          %2140 = vmatprep.subr.mxu0 0.0
          %2141 = vmatpush1.msra.mxu0 0.0
          %2142 = vmatprep.subr.mxu0 0.0
          %2143 = vmatpush1.msra.mxu0 0.0
          %2144 = vmatprep.subr.mxu0 0.0
          %2145 = vmatpush1.msra.mxu0 0.0
          %2146 = vmatprep.subr.mxu0 0.0
          %2147 = vmatpush1.msra.mxu0 0.0
          %2148 = vmatprep.subr.mxu0 0.0
          %2149 = vmatpush1.msra.mxu0 0.0
          %2150 = vmatprep.subr.mxu0 0.0
          %2151 = vmatpush1.msra.mxu0 0.0
          %2152 = vmatprep.subr.mxu0 0.0
          %2153 = vmatpush1.msra.mxu0 0.0
          %2154 = vmatprep.subr.mxu0 0.0
          %2155 = vmatpush1.msra.mxu0 0.0
          %2156 = vmatprep.subr.mxu0 0.0
          %2157 = vmatpush1.msra.mxu0 0.0
          %2158 = vmatprep.subr.mxu0 0.0
          %2159 = vmatpush1.msra.mxu0 0.0
          %2160 = vmatprep.subr.mxu0 0.0
          %2161 = vmatpush1.msra.mxu0 0.0
          %2162 = vmatprep.subr.mxu0 0.0
          %2163 = vmatpush1.msra.mxu0 0.0
          %2164 = vmatprep.subr.mxu0 0.0
          %2165 = vmatpush1.msra.mxu0 0.0
          %2166 = vmatprep.subr.mxu0 0.0
          %2167 = vmatpush1.msra.mxu0 %v2134
          %2168 = vmatprep.subr.mxu0 0.0
          %2169 = vmatpush2.msra.mxu0 0.0
          %2170 = vmatprep.subr.mxu0 0.0
          %2171 = vmatpush2.msra.mxu0 0.0
          %2172 = vmatprep.subr.mxu0 0.0
          %2173 = vmatpush2.msra.mxu0 0.0
          %2174 = vmatprep.subr.mxu0 0.0
          %2175 = vmatpush2.msra.mxu0 0.0
          %2176 = vmatprep.subr.mxu0 0.0
          %2177 = vmatpush2.msra.mxu0 0.0
          %2178 = vmatprep.subr.mxu0 0.0
          %2179 = vmatpush2.msra.mxu0 0.0
          %2180 = vmatprep.subr.mxu0 0.0
          %2181 = vmatpush2.msra.mxu0 0.0
          %2182 = vmatprep.subr.mxu0 0.0
          %2183 = vmatpush2.msra.mxu0 0.0
          %2184 = vmatprep.subr.mxu0 0.0
          %2185 = vmatpush2.msra.mxu0 0.0
          %2186 = vmatprep.subr.mxu0 0.0
          %2187 = vmatpush2.msra.mxu0 0.0
          %2188 = vmatprep.subr.mxu0 0.0
          %2189 = vmatpush2.msra.mxu0 0.0
          %2190 = vmatprep.subr.mxu0 0.0
          %2191 = vmatpush2.msra.mxu0 0.0
          %2192 = vmatprep.subr.mxu0 0.0
          %2193 = vmatpush2.msra.mxu0 0.0
          %2194 = vmatprep.subr.mxu0 0.0
          %2195 = vmatpush2.msra.mxu0 0.0
          %2196 = vmatprep.subr.mxu0 0.0
          %2197 = vmatpush2.msra.mxu0 0.0
          %2198 = vmatprep.subr.mxu0 0.0
          %2199 = vmatpush2.msra.mxu0 0.0
          %2200 = vmatprep.mubr.f32.mxu0 0.0
          %2201 = vmatmul.mubr.f32.gmra.mxu0 %v2086
          %v2202 = vpop.f32.mrf.mxu0
          %v2203 = vadd.f32 0.0, %v2202
          %v2204 = vpop.f32.mrf.mxu0
          %2205 = vmatprep.mubr.f32.mxu0 0.0
          %2206 = vmatmul.mubr.f32.gmra.mxu0 %v2089
          %v2207 = vpop.f32.mrf.mxu0
          %v2208 = vadd.f32 0.0, %v2207
          %v2209 = vpop.f32.mrf.mxu0
          %2210 = vmatprep.mubr.f32.mxu0 0.0
          %2211 = vmatmul.mubr.f32.gmra.mxu0 %v2092
          %v2212 = vpop.f32.mrf.mxu0
          %v2213 = vadd.f32 0.0, %v2212
          %v2214 = vpop.f32.mrf.mxu0
          %2215 = vmatprep.mubr.f32.mxu0 0.0
          %2216 = vmatmul.mubr.f32.gmra.mxu0 %v2095
          %v2217 = vpop.f32.mrf.mxu0
          %v2218 = vadd.f32 0.0, %v2217
          %v2219 = vpop.f32.mrf.mxu0
          %2220 = vmatprep.mubr.f32.mxu0 0.0
          %2221 = vmatmul.mubr.f32.gmra.mxu0 %v2098
          %v2222 = vpop.f32.mrf.mxu0
          %v2223 = vadd.f32 0.0, %v2222
          %v2224 = vpop.f32.mrf.mxu0
          %2225 = vmatprep.mubr.f32.mxu0 0.0
          %2226 = vmatmul.mubr.f32.gmra.mxu0 %v2101
          %v2227 = vpop.f32.mrf.mxu0
          %v2228 = vadd.f32 0.0, %v2227
          %v2229 = vpop.f32.mrf.mxu0
          %2230 = vmatprep.mubr.f32.mxu0 0.0
          %2231 = vmatmul.mubr.f32.gmra.mxu0 %v2104
          %v2232 = vpop.f32.mrf.mxu0
          %v2233 = vadd.f32 0.0, %v2232
          %v2234 = vpop.f32.mrf.mxu0
          %2235 = vmatprep.mubr.f32.mxu0 0.0
          %2236 = vmatmul.mubr.f32.gmra.mxu0 %v2107
          %v2237 = vpop.f32.mrf.mxu0
          %v2238 = vadd.f32 0.0, %v2237
          %v2239 = vpop.f32.mrf.mxu0
          %2240 = vmatprep.mubr.f32.mxu0 0.0
          %2241 = vmatmul.mubr.f32.gmra.mxu0 %v2110
          %v2242 = vpop.f32.mrf.mxu0
          %v2243 = vadd.f32 0.0, %v2242
          %v2244 = vpop.f32.mrf.mxu0
          %2245 = vmatprep.mubr.f32.mxu0 0.0
          %2246 = vmatmul.mubr.f32.gmra.mxu0 %v2113
          %v2247 = vpop.f32.mrf.mxu0
          %v2248 = vadd.f32 0.0, %v2247
          %v2249 = vpop.f32.mrf.mxu0
          %2250 = vmatprep.mubr.f32.mxu0 0.0
          %2251 = vmatmul.mubr.f32.gmra.mxu0 %v2116
          %v2252 = vpop.f32.mrf.mxu0
          %v2253 = vadd.f32 0.0, %v2252
          %v2254 = vpop.f32.mrf.mxu0
          %2255 = vmatprep.mubr.f32.mxu0 0.0
          %2256 = vmatmul.mubr.f32.gmra.mxu0 %v2119
          %v2257 = vpop.f32.mrf.mxu0
          %v2258 = vadd.f32 0.0, %v2257
          %v2259 = vpop.f32.mrf.mxu0
          %2260 = vmatprep.mubr.f32.mxu0 0.0
          %2261 = vmatmul.mubr.f32.gmra.mxu0 %v2122
          %v2262 = vpop.f32.mrf.mxu0
          %v2263 = vadd.f32 0.0, %v2262
          %v2264 = vpop.f32.mrf.mxu0
          %2265 = vmatprep.mubr.f32.mxu0 0.0
          %2266 = vmatmul.mubr.f32.gmra.mxu0 %v2125
          %v2267 = vpop.f32.mrf.mxu0
          %v2268 = vadd.f32 0.0, %v2267
          %v2269 = vpop.f32.mrf.mxu0
          %2270 = vmatprep.mubr.f32.mxu0 0.0
          %2271 = vmatmul.mubr.f32.gmra.mxu0 %v2128
          %v2272 = vpop.f32.mrf.mxu0
          %v2273 = vadd.f32 0.0, %v2272
          %v2274 = vpop.f32.mrf.mxu0
          %2275 = vmatprep.mubr.f32.mxu0 0.0
          %2276 = vmatmul.mubr.f32.gmra.mxu0 %v2131
          %v2277 = vpop.f32.mrf.mxu0
          %v2278 = vadd.f32 0.0, %v2277
          %v2279 = vpop.f32.mrf.mxu0
          %2280 = vdwg.mxu0
          %v2281 = vld [vmem:[#allocation4] sm:$0xff]
          %v2282 = vld [vmem:[#allocation4 + $0x8] sm:$0xff]
          %v2283 = vld [vmem:[#allocation4 + $0x10] sm:$0xff]
          %v2284 = vld [vmem:[#allocation4 + $0x18] sm:$0xff]
          %v2285 = vld [vmem:[#allocation4 + $0x20] sm:$0xff]
          %v2286 = vld [vmem:[#allocation4 + $0x28] sm:$0xff]
          %v2287 = vld [vmem:[#allocation4 + $0x30] sm:$0xff]
          %v2288 = vld [vmem:[#allocation4 + $0x38] sm:$0xff]
          %v2289 = vld [vmem:[#allocation4 + $0x40] sm:$0xff]
          %v2290 = vld [vmem:[#allocation4 + $0x48] sm:$0xff]
          %v2291 = vld [vmem:[#allocation4 + $0x50] sm:$0xff]
          %v2292 = vld [vmem:[#allocation4 + $0x58] sm:$0xff]
          %v2293 = vld [vmem:[#allocation4 + $0x60] sm:$0xff]
          %v2294 = vld [vmem:[#allocation4 + $0x68] sm:$0xff]
          %v2295 = vld [vmem:[#allocation4 + $0x70] sm:$0xff]
          %v2296 = vld [vmem:[#allocation4 + $0x78] sm:$0xff]
          %v2297 = vmul.f32 %v2281, %v2203
          %v2298 = vmul.f32 %v2282, %v2208
          %v2299 = vmul.f32 %v2283, %v2213
          %v2300 = vmul.f32 %v2284, %v2218
          %v2301 = vmul.f32 %v2285, %v2223
          %v2302 = vmul.f32 %v2286, %v2228
          %v2303 = vmul.f32 %v2287, %v2233
          %v2304 = vmul.f32 %v2288, %v2238
          %v2305 = vmul.f32 %v2289, %v2243
          %v2306 = vmul.f32 %v2290, %v2248
          %v2307 = vmul.f32 %v2291, %v2253
          %v2308 = vmul.f32 %v2292, %v2258
          %v2309 = vmul.f32 %v2293, %v2263
          %v2310 = vmul.f32 %v2294, %v2268
          %v2311 = vmul.f32 %v2295, %v2273
          %v2312 = vmul.f32 %v2296, %v2278
          %v2313 = vld [vmem:[%s6] sm:$0xff]
          %v2314 = vld [vmem:[%s6 + $0x8] sm:$0xff]
          %v2315 = vld [vmem:[%s6 + $0x10] sm:$0xff]
          %v2316 = vld [vmem:[%s6 + $0x18] sm:$0xff]
          %v2317 = vld [vmem:[%s7] sm:$0x1]
          %v2319 = vlaneseq
          %v2320 = vshrl.u32 %v2319, 7
          %v2321 = vsub.s32 0, %v2320
          %v2322 = vrot.slane %v2317, %v2321
          %v2325 = vsel %vm2028, %v2297, 0
          %v2328 = vsel %vm2028, %v2298, 0
          %v2331 = vsel %vm2028, %v2299, 0
          %v2334 = vsel %vm2028, %v2300, 0
          %v2337 = vsel %vm2028, %v2301, 0
          %v2340 = vsel %vm2028, %v2302, 0
          %v2343 = vsel %vm2028, %v2303, 0
          %v2346 = vsel %vm2028, %v2304, 0
          %v2349 = vsel %vm2028, %v2305, 0
          %v2352 = vsel %vm2028, %v2306, 0
          %v2355 = vsel %vm2028, %v2307, 0
          %v2358 = vsel %vm2028, %v2308, 0
          %v2361 = vsel %vm2028, %v2309, 0
          %v2364 = vsel %vm2028, %v2310, 0
          %v2367 = vsel %vm2028, %v2311, 0
          %v2370 = vsel %vm2028, %v2312, 0
          %2372 = vmatprep.subr.mxu0 0.0
          %2373 = vmatpush1.msra.mxu0 0.0
          %2374 = vmatprep.subr.mxu0 0.0
          %2375 = vmatpush1.msra.mxu0 0.0
          %2376 = vmatprep.subr.mxu0 0.0
          %2377 = vmatpush1.msra.mxu0 0.0
          %2378 = vmatprep.subr.mxu0 0.0
          %2379 = vmatpush1.msra.mxu0 0.0
          %2380 = vmatprep.subr.mxu0 0.0
          %2381 = vmatpush1.msra.mxu0 0.0
          %2382 = vmatprep.subr.mxu0 0.0
          %2383 = vmatpush1.msra.mxu0 0.0
          %2384 = vmatprep.subr.mxu0 0.0
          %2385 = vmatpush1.msra.mxu0 0.0
          %2386 = vmatprep.subr.mxu0 0.0
          %2387 = vmatpush1.msra.mxu0 0.0
          %2388 = vmatprep.subr.mxu0 0.0
          %2389 = vmatpush1.msra.mxu0 0.0
          %2390 = vmatprep.subr.mxu0 0.0
          %2391 = vmatpush1.msra.mxu0 0.0
          %2392 = vmatprep.subr.mxu0 0.0
          %2393 = vmatpush1.msra.mxu0 0.0
          %2394 = vmatprep.subr.mxu0 0.0
          %2395 = vmatpush1.msra.mxu0 0.0
          %2396 = vmatprep.subr.mxu0 0.0
          %2397 = vmatpush1.msra.mxu0 %v2316
          %2398 = vmatprep.subr.mxu0 0.0
          %2399 = vmatpush1.msra.mxu0 %v2315
          %2400 = vmatprep.subr.mxu0 0.0
          %2401 = vmatpush1.msra.mxu0 %v2314
          %2402 = vmatprep.subr.mxu0 0.0
          %2403 = vmatpush1.msra.mxu0 %v2313
          %2404 = vmatprep.subr.mxu0 0.0
          %2405 = vmatpush2.msra.mxu0 0.0
          %2406 = vmatprep.subr.mxu0 0.0
          %2407 = vmatpush2.msra.mxu0 0.0
          %2408 = vmatprep.subr.mxu0 0.0
          %2409 = vmatpush2.msra.mxu0 0.0
          %2410 = vmatprep.subr.mxu0 0.0
          %2411 = vmatpush2.msra.mxu0 0.0
          %2412 = vmatprep.subr.mxu0 0.0
          %2413 = vmatpush2.msra.mxu0 0.0
          %2414 = vmatprep.subr.mxu0 0.0
          %2415 = vmatpush2.msra.mxu0 0.0
          %2416 = vmatprep.subr.mxu0 0.0
          %2417 = vmatpush2.msra.mxu0 0.0
          %2418 = vmatprep.subr.mxu0 0.0
          %2419 = vmatpush2.msra.mxu0 0.0
          %2420 = vmatprep.subr.mxu0 0.0
          %2421 = vmatpush2.msra.mxu0 0.0
          %2422 = vmatprep.subr.mxu0 0.0
          %2423 = vmatpush2.msra.mxu0 0.0
          %2424 = vmatprep.subr.mxu0 0.0
          %2425 = vmatpush2.msra.mxu0 0.0
          %2426 = vmatprep.subr.mxu0 0.0
          %2427 = vmatpush2.msra.mxu0 0.0
          %2428 = vmatprep.subr.mxu0 0.0
          %2429 = vmatpush2.msra.mxu0 0.0
          %2430 = vmatprep.subr.mxu0 0.0
          %2431 = vmatpush2.msra.mxu0 0.0
          %2432 = vmatprep.subr.mxu0 0.0
          %2433 = vmatpush2.msra.mxu0 0.0
          %2434 = vmatprep.subr.mxu0 0.0
          %2435 = vmatpush2.msra.mxu0 0.0
          %2436 = vmatprep.mubr.f32.mxu0 0.0
          %2437 = vmatmul.mubr.f32.gmra.mxu0 %v2325
          %v2438 = vpop.f32.mrf.mxu0
          %v2439 = vadd.f32 %v2322, %v2438
          %v2440 = vpop.f32.mrf.mxu0
          %2441 = vmatprep.mubr.f32.mxu0 0.0
          %2442 = vmatmul.mubr.f32.gmra.mxu0 %v2328
          %v2443 = vpop.f32.mrf.mxu0
          %v2444 = vadd.f32 %v2322, %v2443
          %v2445 = vpop.f32.mrf.mxu0
          %2446 = vmatprep.mubr.f32.mxu0 0.0
          %2447 = vmatmul.mubr.f32.gmra.mxu0 %v2331
          %v2448 = vpop.f32.mrf.mxu0
          %v2449 = vadd.f32 %v2322, %v2448
          %v2450 = vpop.f32.mrf.mxu0
          %2451 = vmatprep.mubr.f32.mxu0 0.0
          %2452 = vmatmul.mubr.f32.gmra.mxu0 %v2334
          %v2453 = vpop.f32.mrf.mxu0
          %v2454 = vadd.f32 %v2322, %v2453
          %v2455 = vpop.f32.mrf.mxu0
          %2456 = vmatprep.mubr.f32.mxu0 0.0
          %2457 = vmatmul.mubr.f32.gmra.mxu0 %v2337
          %v2458 = vpop.f32.mrf.mxu0
          %v2459 = vadd.f32 %v2322, %v2458
          %v2460 = vpop.f32.mrf.mxu0
          %2461 = vmatprep.mubr.f32.mxu0 0.0
          %2462 = vmatmul.mubr.f32.gmra.mxu0 %v2340
          %v2463 = vpop.f32.mrf.mxu0
          %v2464 = vadd.f32 %v2322, %v2463
          %v2465 = vpop.f32.mrf.mxu0
          %2466 = vmatprep.mubr.f32.mxu0 0.0
          %2467 = vmatmul.mubr.f32.gmra.mxu0 %v2343
          %v2468 = vpop.f32.mrf.mxu0
          %v2469 = vadd.f32 %v2322, %v2468
          %v2470 = vpop.f32.mrf.mxu0
          %2471 = vmatprep.mubr.f32.mxu0 0.0
          %2472 = vmatmul.mubr.f32.gmra.mxu0 %v2346
          %v2473 = vpop.f32.mrf.mxu0
          %v2474 = vadd.f32 %v2322, %v2473
          %v2475 = vpop.f32.mrf.mxu0
          %2476 = vmatprep.mubr.f32.mxu0 0.0
          %2477 = vmatmul.mubr.f32.gmra.mxu0 %v2349
          %v2478 = vpop.f32.mrf.mxu0
          %v2479 = vadd.f32 %v2322, %v2478
          %v2480 = vpop.f32.mrf.mxu0
          %2481 = vmatprep.mubr.f32.mxu0 0.0
          %2482 = vmatmul.mubr.f32.gmra.mxu0 %v2352
          %v2483 = vpop.f32.mrf.mxu0
          %v2484 = vadd.f32 %v2322, %v2483
          %v2485 = vpop.f32.mrf.mxu0
          %2486 = vmatprep.mubr.f32.mxu0 0.0
          %2487 = vmatmul.mubr.f32.gmra.mxu0 %v2355
          %v2488 = vpop.f32.mrf.mxu0
          %v2489 = vadd.f32 %v2322, %v2488
          %v2490 = vpop.f32.mrf.mxu0
          %2491 = vmatprep.mubr.f32.mxu0 0.0
          %2492 = vmatmul.mubr.f32.gmra.mxu0 %v2358
          %v2493 = vpop.f32.mrf.mxu0
          %v2494 = vadd.f32 %v2322, %v2493
          %v2495 = vpop.f32.mrf.mxu0
          %2496 = vmatprep.mubr.f32.mxu0 0.0
          %2497 = vmatmul.mubr.f32.gmra.mxu0 %v2361
          %v2498 = vpop.f32.mrf.mxu0
          %v2499 = vadd.f32 %v2322, %v2498
          %v2500 = vpop.f32.mrf.mxu0
          %2501 = vmatprep.mubr.f32.mxu0 0.0
          %2502 = vmatmul.mubr.f32.gmra.mxu0 %v2364
          %v2503 = vpop.f32.mrf.mxu0
          %v2504 = vadd.f32 %v2322, %v2503
          %v2505 = vpop.f32.mrf.mxu0
          %2506 = vmatprep.mubr.f32.mxu0 0.0
          %2507 = vmatmul.mubr.f32.gmra.mxu0 %v2367
          %v2508 = vpop.f32.mrf.mxu0
          %v2509 = vadd.f32 %v2322, %v2508
          %v2510 = vpop.f32.mrf.mxu0
          %2511 = vmatprep.mubr.f32.mxu0 0.0
          %2512 = vmatmul.mubr.f32.gmra.mxu0 %v2370
          %v2513 = vpop.f32.mrf.mxu0
          %v2514 = vadd.f32 %v2322, %v2513
          %v2515 = vpop.f32.mrf.mxu0
          %2516 = vdwg.mxu0
          %2517 = vst.msk [vmem:[%s409] sm:$0xff] %vm2028, %v2439
          %2518 = vst.msk [vmem:[%s409 + $0x8] sm:$0xff] %vm2028, %v2444
          %2519 = vst.msk [vmem:[%s409 + $0x10] sm:$0xff] %vm2028, %v2449
          %2520 = vst.msk [vmem:[%s409 + $0x18] sm:$0xff] %vm2028, %v2454
          %2521 = vst.msk [vmem:[%s409 + $0x20] sm:$0xff] %vm2028, %v2459
          %2522 = vst.msk [vmem:[%s409 + $0x28] sm:$0xff] %vm2028, %v2464
          %2523 = vst.msk [vmem:[%s409 + $0x30] sm:$0xff] %vm2028, %v2469
          %2524 = vst.msk [vmem:[%s409 + $0x38] sm:$0xff] %vm2028, %v2474
          %2525 = vst.msk [vmem:[%s409 + $0x40] sm:$0xff] %vm2028, %v2479
          %2526 = vst.msk [vmem:[%s409 + $0x48] sm:$0xff] %vm2028, %v2484
          %2527 = vst.msk [vmem:[%s409 + $0x50] sm:$0xff] %vm2028, %v2489
          %2528 = vst.msk [vmem:[%s409 + $0x58] sm:$0xff] %vm2028, %v2494
          %2529 = vst.msk [vmem:[%s409 + $0x60] sm:$0xff] %vm2028, %v2499
          %2530 = vst.msk [vmem:[%s409 + $0x68] sm:$0xff] %vm2028, %v2504
          %2531 = vst.msk [vmem:[%s409 + $0x70] sm:$0xff] %vm2028, %v2509
          %2532 = vst.msk [vmem:[%s409 + $0x78] sm:$0xff] %vm2028, %v2514
        $region98: #{tpu_custom_call.1} parent=85 // pred_fallthru
          _
        %s2533 = smul.u32 16, %s23
        %p2534 = scmp.lt.s32.totalorder %s2533, 31
        %s2535 = scalar_select %p2534, %s2533, 31
        %s2536 = smul.addr %s2535, 8
        %s2537 = scalar_lea.vmem %s8, %s2536
        // Predicated region
        $region99: #{tpu_custom_call.1} parent=85 // pred_check
          %p2538 = pneg %p234
        $region100: #{tpu_custom_call.1} parent=85 // pred_check_branch
          %2540 = sbr.rel (%p2538) target = $region102
        $region101: #{tpu_custom_call.1} parent=85 // pred_region
          %s2541 = smul.u32 16, %s23
        $region102: #{tpu_custom_call.1} parent=85 // pred_fallthru
          _
      $region86: #{tpu_custom_call.1} parent=5 // pred_fallthru
        _
      %p2542 = scmp.le.s32.totalorder 2, %s14
      // Predicated region
      $region103: #{tpu_custom_call.1} parent=5 // pred_check
        %p2543 = pneg %p2542
      $region104: #{tpu_custom_call.1} parent=5 // pred_check_branch
        %2545 = sbr.rel (%p2543) target = $region106
      $region105: #{tpu_custom_call.1} parent=5 // pred_region
        %s2546 = ssub.s32 %s14, 2
        // Predicated region
        $region107: #{tpu_custom_call.1} parent=105 // pred_check
          %p2547 = pneg %p240
        $region108: #{tpu_custom_call.1} parent=105 // pred_check_branch
          %2549 = sbr.rel (%p2547) target = $region110
        $region109: #{tpu_custom_call.1} parent=105 // pred_region
          %s2550 = smul.u32 16, %s25
          %p2551 = scmp.lt.s32.totalorder %s2550, 31
          %s2552 = scalar_select %p2551, %s2550, 31
          %s2553 = smul.addr %s2552, 8
          %s2554 = scalar_lea.vmem %s8, %s2553
        $region110: #{tpu_custom_call.1} parent=105 // pred_fallthru
          _
      $region106: #{tpu_custom_call.1} parent=5 // pred_fallthru
        _
    $region6: #{tpu_custom_call.1} parent=1 // loop_footer
      %s18 = sadd.s32 1, %s14
    $region7: #{tpu_custom_call.1} parent=1 // loop_footer_branch
      %13 = sbr.rel target = $region3
    $region8: #{tpu_custom_call.1} parent=1 // loop_exit
      _

</llo_original>
